<compile_context>
chip_gen: v5e
topology: v5e:2x2
jax: 0.10.0
libtpu: 0.0.40
codegen_flags: <defaults>
</compile_context>

<pallas_src>
import functools

import numpy as np
import jax
import jax.numpy as jnp
from jax import lax
from jax.experimental import pallas as pl
from jax.experimental.pallas import tpu as pltpu


# ----------------------------------------------------------------------------
# Tuning knobs
# ----------------------------------------------------------------------------

_MM_TILE_M = 256                    # rows of A per grid step in the fused matmul
_RNN_TIME_CHUNK = 64                # time steps per grid step in the recurrences
_VMEM_LIMIT = 32 * 1024 * 1024      # explicit scoped-VMEM limit (safe on v5e/v6e/v7x)
_BN_EPS = 1e-5


def _select_matmul_dtype():
    # bf16 MXU operands on v6e/v7x (and v2-v4); keep f32 on v5 per perf review.
    try:
        kind = jax.devices()[0].device_kind.lower()
    except Exception:
        return jnp.float32
    if "v5" in kind:
        return jnp.float32
    return jnp.bfloat16


_MM_DTYPE = _select_matmul_dtype()


def _round_up(x, m):
    return (x + m - 1) // m * m


def _mm_compiler_params():
    return pltpu.CompilerParams(dimension_semantics=("parallel",),
                                vmem_limit_bytes=_VMEM_LIMIT)


# ----------------------------------------------------------------------------
# Pallas kernels
# ----------------------------------------------------------------------------

def _mm_bias_kernel(a_ref, b_ref, bias_ref, o_ref, *, relu):
    """o = relu_opt(a @ b + bias)."""
    acc = jnp.dot(a_ref[...], b_ref[...], preferred_element_type=jnp.float32)
    acc = acc + bias_ref[...]
    if relu:
        acc = jnp.maximum(acc, 0.0)
    o_ref[...] = acc


def _mm_bias_affine_kernel(a_ref, b_ref, bias_ref, scale_ref, shift_ref, o_ref, *, relu):
    """o = relu_opt(a @ b + bias) * scale + shift (per output column, BN eval)."""
    acc = jnp.dot(a_ref[...], b_ref[...], preferred_element_type=jnp.float32)
    acc = acc + bias_ref[...]
    if relu:
        acc = jnp.maximum(acc, 0.0)
    o_ref[...] = acc * scale_ref[...] + shift_ref[...]


def _highway_kernel(a_ref, w_ref, b_ref, o_ref, *, dp):
    """Fused highway layer: y = g * relu(x@W1+b1) + (1-g)*x, g = sigmoid(x@W2+b2).
    W is packed as [W1 | W2] of shape (Dp, 2*Dp)."""
    x = a_ref[...]
    acc = jnp.dot(x, w_ref[...], preferred_element_type=jnp.float32) + b_ref[...]
    h1 = jnp.maximum(acc[:, :dp], 0.0)
    g = jax.nn.sigmoid(acc[:, dp:])
    o_ref[...] = g * h1 + (1.0 - g) * x


def _gru_kernel(x_ref, whh_ref, bhh_ref, o_ref, h_ref, *, dh, tc):
    """Bidirectional GRU recurrence over one time chunk.

    Both directions are packed along the feature axis (width dh = 2*Hp) with a
    block-diagonal hidden weight, so each step is ONE (B, dh) @ (dh, 3*dh)
    matmul covering all gates of both directions.  The hidden state is carried
    across grid steps in VMEM scratch."""
    @pl.when(pl.program_id(0) == 0)
    def _():
        h_ref[...] = jnp.zeros_like(h_ref)

    def body(t, h):
        hh = jnp.dot(h, whh_ref[...], preferred_element_type=jnp.float32) + bhh_ref[...]
        xt = x_ref[t]
        r = jax.nn.sigmoid(xt[:, :dh] + hh[:, :dh])
        z = jax.nn.sigmoid(xt[:, dh:2 * dh] + hh[:, dh:2 * dh])
        n = jnp.tanh(xt[:, 2 * dh:] + r * hh[:, 2 * dh:])
        h_new = (1.0 - z) * n + z * h
        o_ref[t] = h_new
        return h_new

    h_ref[...] = lax.fori_loop(0, tc, body, h_ref[...])


def _lstm_kernel(x_ref, whh_ref, bhh_ref, o_ref, h_ref, c_ref, *, dh, tc):
    """Bidirectional LSTM recurrence over one time chunk (same packing as GRU)."""
    @pl.when(pl.program_id(0) == 0)
    def _():
        h_ref[...] = jnp.zeros_like(h_ref)
        c_ref[...] = jnp.zeros_like(c_ref)

    def body(t, carry):
        h, c = carry
        g_all = x_ref[t] + jnp.dot(h, whh_ref[...], preferred_element_type=jnp.float32) + bhh_ref[...]
        i = jax.nn.sigmoid(g_all[:, :dh])
        f = jax.nn.sigmoid(g_all[:, dh:2 * dh])
        g = jnp.tanh(g_all[:, 2 * dh:3 * dh])
        o = jax.nn.sigmoid(g_all[:, 3 * dh:])
        c_new = f * c + i * g
        h_new = o * jnp.tanh(c_new)
        o_ref[t] = h_new
        return (h_new, c_new)

    h_fin, c_fin = lax.fori_loop(0, tc, body, (h_ref[...], c_ref[...]))
    h_ref[...] = h_fin
    c_ref[...] = c_fin


# ----------------------------------------------------------------------------
# Kernel wrappers
# ----------------------------------------------------------------------------

def fused_matmul(a, b, bias=None, scale=None, shift=None, relu=False):
    """y = relu_opt(a @ b + bias) * scale + shift, tiled over M rows.

    When relu=False the per-column affine is folded into the weight/bias so the
    kernel only streams a/b/bias.  MXU operands are cast to bf16 on chips where
    that is beneficial (f32 accumulation is kept)."""
    a = jnp.asarray(a, jnp.float32)
    b = jnp.asarray(b, jnp.float32)
    M, K = a.shape
    _, N = b.shape
    Kp = _round_up(K, 128)
    Np = _round_up(N, 128)

    # Fold BN-style affine into weight/bias when nothing nonlinear sits between.
    if not relu and (scale is not None or shift is not None):
        scale_v = jnp.ones((N,), jnp.float32) if scale is None else jnp.asarray(scale, jnp.float32)
        shift_v = jnp.zeros((N,), jnp.float32) if shift is None else jnp.asarray(shift, jnp.float32)
        bias_v = jnp.zeros((N,), jnp.float32) if bias is None else jnp.asarray(bias, jnp.float32)
        b = b * scale_v[None, :]
        bias = bias_v * scale_v + shift_v
        scale = None
        shift = None

    tm = _MM_TILE_M if M >= _MM_TILE_M else _round_up(M, 16)
    Mp = _round_up(M, tm)

    a_p = jnp.zeros((Mp, Kp), jnp.float32).at[:M, :K].set(a).astype(_MM_DTYPE)
    b_p = jnp.zeros((Kp, Np), jnp.float32).at[:K, :N].set(b).astype(_MM_DTYPE)
    bias_p = jnp.zeros((1, Np), jnp.float32)
    if bias is not None:
        bias_p = bias_p.at[0, :N].set(jnp.asarray(bias, jnp.float32))

    if scale is None and shift is None:
        kernel = functools.partial(_mm_bias_kernel, relu=relu)
        in_specs = [pl.BlockSpec((tm, Kp), lambda i: (i, 0)),
                    pl.BlockSpec((Kp, Np), lambda i: (0, 0)),
                    pl.BlockSpec((1, Np), lambda i: (0, 0))]
        operands = (a_p, b_p, bias_p)
    else:
        scale_p = jnp.ones((1, Np), jnp.float32)
        if scale is not None:
            scale_p = scale_p.at[0, :N].set(jnp.asarray(scale, jnp.float32))
        shift_p = jnp.zeros((1, Np), jnp.float32)
        if shift is not None:
            shift_p = shift_p.at[0, :N].set(jnp.asarray(shift, jnp.float32))
        kernel = functools.partial(_mm_bias_affine_kernel, relu=relu)
        in_specs = [pl.BlockSpec((tm, Kp), lambda i: (i, 0)),
                    pl.BlockSpec((Kp, Np), lambda i: (0, 0)),
                    pl.BlockSpec((1, Np), lambda i: (0, 0)),
                    pl.BlockSpec((1, Np), lambda i: (0, 0)),
                    pl.BlockSpec((1, Np), lambda i: (0, 0))]
        operands = (a_p, b_p, bias_p, scale_p, shift_p)

    out = pl.pallas_call(
        kernel,
        out_shape=jax.ShapeDtypeStruct((Mp, Np), jnp.float32),
        grid=(Mp // tm,),
        in_specs=in_specs,
        out_specs=pl.BlockSpec((tm, Np), lambda i: (i, 0)),
        compiler_params=_mm_compiler_params(),
    )(*operands)
    return out[:M, :N]


def highway(x_btc, p):
    """Fused highway layer: one (D, 2D) matmul, sigmoid + gating in the kernel."""
    B, T, D = x_btc.shape
    Dp = _round_up(D, 128)
    M = B * T
    tm = _MM_TILE_M if M >= _MM_TILE_M else _round_up(M, 16)
    Mp = _round_up(M, tm)
    a_p = jnp.zeros((Mp, Dp), jnp.float32).at[:M, :D].set(x_btc.reshape(M, D))
    w_p = jnp.zeros((Dp, 2 * Dp), jnp.float32)
    w_p = w_p.at[:D, :D].set(p['w1']).at[:D, Dp:Dp + D].set(p['w2'])
    b_p = jnp.zeros((1, 2 * Dp), jnp.float32)
    b_p = b_p.at[0, :D].set(p['b1']).at[0, Dp:Dp + D].set(p['b2'])
    out = pl.pallas_call(
        functools.partial(_highway_kernel, dp=Dp),
        out_shape=jax.ShapeDtypeStruct((Mp, Dp), jnp.float32),
        grid=(Mp // tm,),
        in_specs=[pl.BlockSpec((tm, Dp), lambda i: (i, 0)),
                  pl.BlockSpec((Dp, 2 * Dp), lambda i: (0, 0)),
                  pl.BlockSpec((1, 2 * Dp), lambda i: (0, 0))],
        out_specs=pl.BlockSpec((tm, Dp), lambda i: (i, 0)),
        compiler_params=_mm_compiler_params(),
    )(a_p, w_p, b_p)
    return out[:M, :D].reshape(B, T, D)


def _run_recurrence(kernel_fn, gates_tbd, whh, bhh, dh, num_state):
    """Run a time-chunked recurrence.  gates_tbd: (T, B, G*dh) precomputed input
    projections; whh: (dh, G*dh); bhh: (1, G*dh).  Returns (T, B, dh)."""
    T, B, GD = gates_tbd.shape
    tc = min(_RNN_TIME_CHUNK, T)
    Tp = _round_up(T, tc)
    if Tp != T:
        gates_tbd = jnp.pad(gates_tbd, ((0, Tp - T), (0, 0), (0, 0)))
    out = pl.pallas_call(
        functools.partial(kernel_fn, dh=dh, tc=tc),
        out_shape=jax.ShapeDtypeStruct((Tp, B, dh), jnp.float32),
        grid=(Tp // tc,),
        in_specs=[pl.BlockSpec((tc, B, GD), lambda i: (i, 0, 0)),
                  pl.BlockSpec((dh, GD), lambda i: (0, 0)),
                  pl.BlockSpec((1, GD), lambda i: (0, 0))],
        out_specs=pl.BlockSpec((tc, B, dh), lambda i: (i, 0, 0)),
        scratch_shapes=[pltpu.VMEM((B, dh), jnp.float32) for _ in range(num_state)],
        compiler_params=pltpu.CompilerParams(
            dimension_semantics=("arbitrary",),
            vmem_limit_bytes=_VMEM_LIMIT),
    )(gates_tbd, whh, bhh)
    return out[:T]


# ----------------------------------------------------------------------------
# Bidirectional RNN layers (one input-projection matmul + one recurrence call)
# ----------------------------------------------------------------------------

def _pack_dir_ih(wih, bih, H, Hp, G):
    """Arrange PyTorch (G*H, D) input weights into (D, G*Hp) lane-dense blocks."""
    D = wih.shape[1]
    W = jnp.zeros((D, G * Hp), jnp.float32)
    b = jnp.zeros((G * Hp,), jnp.float32)
    for g in range(G):
        W = W.at[:, g * Hp:g * Hp + H].set(wih[g * H:(g + 1) * H, :].T)
        b = b.at[g * Hp:g * Hp + H].set(bih[g * H:(g + 1) * H])
    return W, b


def _pack_bidir_hh(whh_f, bhh_f, whh_b, bhh_b, H, Hp, G):
    """Block-diagonal hidden weights so one matmul serves both directions."""
    dh = 2 * Hp
    W = jnp.zeros((dh, G * dh), jnp.float32)
    b = jnp.zeros((1, G * dh), jnp.float32)
    for g in range(G):
        W = W.at[0:H, g * dh:g * dh + H].set(whh_f[g * H:(g + 1) * H, :].T)
        W = W.at[Hp:Hp + H, g * dh + Hp:g * dh + Hp + H].set(whh_b[g * H:(g + 1) * H, :].T)
        b = b.at[0, g * dh:g * dh + H].set(bhh_f[g * H:(g + 1) * H])
        b = b.at[0, g * dh + Hp:g * dh + Hp + H].set(bhh_b[g * H:(g + 1) * H])
    return W, b


def _birnn_gates(x_btc, p, H, Hp, G, bwd_time_index=None):
    """ONE fused matmul producing all gates for both directions, then interleave
    into the (T, B, G*2*Hp) layout expected by the recurrence kernel."""
    B, T, D = x_btc.shape
    Wf, bf = _pack_dir_ih(p['wih_f'], p['bih_f'], H, Hp, G)
    Wb, bb = _pack_dir_ih(p['wih_b'], p['bih_b'], H, Hp, G)
    W = jnp.concatenate([Wf, Wb], axis=1)
    bias = jnp.concatenate([bf, bb], axis=0)
    g_all = fused_matmul(x_btc.reshape(B * T, D), W, bias=bias)       # (B*T, 2*G*Hp)
    gf = g_all[:, :G * Hp].reshape(B, T, G, Hp)
    gb = g_all[:, G * Hp:].reshape(B, T, G * Hp)
    if bwd_time_index is None:
        gb = gb[:, ::-1, :]                                           # full time reverse
    else:
        idx = jnp.broadcast_to(bwd_time_index[:, :, None], (B, T, G * Hp))
        gb = jnp.take_along_axis(gb, idx, axis=1)                     # per-sequence reverse
    gb = gb.reshape(B, T, G, Hp)
    gates = jnp.stack([gf, gb], axis=3).reshape(B, T, G * 2 * Hp)
    return jnp.transpose(gates, (1, 0, 2))                            # (T, B, G*2*Hp)


def bigru(x_btc, p):
    """Bidirectional GRU; both directions run in one Pallas recurrence call."""
    B, T, _ = x_btc.shape
    H = p['whh_f'].shape[1]
    Hp = _round_up(H, 128)
    G = 3
    gates = _birnn_gates(x_btc, p, H, Hp, G)
    whh, bhh = _pack_bidir_hh(p['whh_f'], p['bhh_f'], p['whh_b'], p['bhh_b'], H, Hp, G)
    out = _run_recurrence(_gru_kernel, gates, whh, bhh, dh=2 * Hp, num_state=1)
    out = jnp.transpose(out, (1, 0, 2))                               # (B, T, 2*Hp)
    fwd = out[:, :, :H]
    bwd = out[:, ::-1, Hp:Hp + H]
    return jnp.concatenate([fwd, bwd], axis=-1)


def bilstm_packed(x_btc, p, rev_idx):
    """Bidirectional LSTM with pack_padded_sequence semantics: the backward
    direction is reversed per-sequence via rev_idx (precomputed on host)."""
    B, T, _ = x_btc.shape
    H = p['whh_f'].shape[1]
    Hp = _round_up(H, 128)
    G = 4
    gates = _birnn_gates(x_btc, p, H, Hp, G, bwd_time_index=rev_idx)
    whh, bhh = _pack_bidir_hh(p['whh_f'], p['bhh_f'], p['whh_b'], p['bhh_b'], H, Hp, G)
    out = _run_recurrence(_lstm_kernel, gates, whh, bhh, dh=2 * Hp, num_state=2)
    out = jnp.transpose(out, (1, 0, 2))                               # (B, T, 2*Hp)
    fwd = out[:, :, :H]
    idx = jnp.broadcast_to(rev_idx[:, :, None], (B, T, H))
    bwd = jnp.take_along_axis(out[:, :, Hp:Hp + H], idx, axis=1)
    return jnp.concatenate([fwd, bwd], axis=-1)


# ----------------------------------------------------------------------------
# Convolutions / CBHG / SeriesPredictor
# ----------------------------------------------------------------------------

def conv1d(x_btc, weight, bias=None, relu=False, bn_scale=None, bn_shift=None):
    """Conv1d with padding=kernel//2 realised as im2col + fused Pallas matmul.
    TODO(synk): an in-kernel tap-accumulation conv would avoid the k-fold im2col
    duplication of activations for very long sequences."""
    Cout, Cin, k = weight.shape
    pad = k // 2
    B, T, _ = x_btc.shape
    xp = jnp.pad(x_btc, ((0, 0), (pad, pad), (0, 0)))
    T_out = T + 2 * pad - k + 1
    patches = jnp.concatenate([xp[:, i:i + T_out, :] for i in range(k)], axis=-1)
    w_mat = jnp.transpose(weight, (2, 1, 0)).reshape(k * Cin, Cout)
    out = fused_matmul(patches.reshape(B * T_out, k * Cin), w_mat,
                       bias=bias, relu=relu, scale=bn_scale, shift=bn_shift)
    return out.reshape(B, T_out, Cout)


def _bn_affine(p):
    scale = p['gamma'] / jnp.sqrt(p['running_var'] + _BN_EPS)
    shift = p['beta'] - p['running_mean'] * scale
    return scale, shift


def batchnorm_conv(x_btc, p, relu):
    """BatchNormConv: Conv1d(no bias) -> optional ReLU -> BatchNorm1d (eval stats)."""
    scale, shift = _bn_affine(p)
    return conv1d(x_btc, p['weight'], bias=None, relu=relu,
                  bn_scale=scale, bn_shift=shift)


def cbhg_conv_bank(x_btc, bank_params):
    """All K conv-bank branches (conv -> relu -> BN) fused into ONE lane-dense
    matmul that writes the channel-concatenated bank output directly."""
    B, T, Cin = x_btc.shape
    K = len(bank_params)
    d_min = -(K // 2)
    d_max = (K - 1) // 2
    n_off = d_max - d_min + 1
    xp = jnp.pad(x_btc, ((0, 0), (-d_min, d_max), (0, 0)))
    patches = jnp.concatenate([xp[:, o:o + T, :] for o in range(n_off)], axis=-1)
    couts = [int(bp['weight'].shape[0]) for bp in bank_params]
    n_total = sum(couts)
    W = jnp.zeros((n_off * Cin, n_total), jnp.float32)
    scale = jnp.zeros((n_total,), jnp.float32)
    shift = jnp.zeros((n_total,), jnp.float32)
    col = 0
    for bp in bank_params:
        Cout, _, k = bp['weight'].shape
        w = jnp.transpose(bp['weight'], (2, 1, 0))                    # (k, Cin, Cout)
        for i in range(k):
            o = (i - k // 2) - d_min
            W = W.at[o * Cin:(o + 1) * Cin, col:col + Cout].set(w[i])
        s, sh = _bn_affine(bp)
        scale = scale.at[col:col + Cout].set(s)
        shift = shift.at[col:col + Cout].set(sh)
        col += Cout
    out = fused_matmul(patches.reshape(B * T, n_off * Cin), W,
                       bias=None, relu=True, scale=scale, shift=shift)
    return out.reshape(B, T, n_total)


def cbhg(x_btc, p):
    """CBHG (fused conv bank + maxpool + projections + residual + highways + BiGRU)."""
    residual = x_btc
    B, T, _ = x_btc.shape
    conv_bank = cbhg_conv_bank(x_btc, p['bank'])
    # MaxPool1d(kernel=2, stride=1, padding=1)[:, :, :T] -> max(x[t-1], x[t])
    left = jnp.pad(conv_bank, ((0, 0), (1, 0), (0, 0)),
                   constant_values=-jnp.inf)[:, :T, :]
    h = jnp.maximum(conv_bank, left)
    h = batchnorm_conv(h, p['proj1'], relu=True)
    h = batchnorm_conv(h, p['proj2'], relu=False)
    h = h + residual
    if p['pre_highway'] is not None:
        D = h.shape[-1]
        h = fused_matmul(h.reshape(B * T, D), p['pre_highway']).reshape(B, T, -1)
    for hw in p['highways']:
        h = highway(h, hw)
    return bigru(h, p['rnn'])


def series_predictor(p, tokens, spk_emb, alpha=1.0):
    emb = p['embedding'][tokens]                                      # (B, T, emb_dim)
    spk = jnp.repeat(spk_emb[:, None, :], emb.shape[1], axis=1)
    h = jnp.concatenate([emb, spk], axis=2)
    for conv_p in p['convs']:
        h = batchnorm_conv(h, conv_p, relu=True)                      # dropout: eval no-op
    h = bigru(h, p['rnn'])
    B, T, D = h.shape
    out = fused_matmul(h.reshape(B * T, D), p['lin']['w'], bias=p['lin']['b'])
    return out.reshape(B, T, 1) / alpha


# ----------------------------------------------------------------------------
# Full ForwardTacotron forward pass (two jitted halves + host index building)
# ----------------------------------------------------------------------------

@functools.partial(jax.jit, static_argnums=(5, 6))
def _pre_lr_jit(p, tokens, spk_emb, pitch, energy, pitch_strength, energy_strength):
    dur_hat = series_predictor(p['dur_pred'], tokens, spk_emb)[..., 0]
    pitch_hat = jnp.transpose(series_predictor(p['pitch_pred'], tokens, spk_emb), (0, 2, 1))
    energy_hat = jnp.transpose(series_predictor(p['energy_pred'], tokens, spk_emb), (0, 2, 1))

    h = p['embedding'][tokens]                                        # (B, T, embed)
    h = cbhg(h, p['prenet'])                                          # (B, T, 2*prenet)
    pp = conv1d(pitch[..., None], p['pitch_proj']['weight'], bias=p['pitch_proj']['bias'])
    h = h + pp * pitch_strength
    ep = conv1d(energy[..., None], p['energy_proj']['weight'], bias=p['energy_proj']['bias'])
    h = h + ep * energy_strength
    return dur_hat, pitch_hat, energy_hat, h


def _pad_time(x_bct, max_len, value):
    x_bct = x_bct[:, :, :max_len]
    pad_amt = max_len - x_bct.shape[2]
    return jnp.pad(x_bct, ((0, 0), (0, 0), (0, pad_amt)), constant_values=value)


@functools.partial(jax.jit, static_argnums=(6, 7))
def _post_lr_jit(p, h, spk_emb, lr_idx, rev_idx, valid_mask, max_len, padding_value):
    B, _, C = h.shape
    T_reg = lr_idx.shape[1]
    idx = jnp.broadcast_to(lr_idx[:, :, None], (B, T_reg, C))
    x = jnp.take_along_axis(h, idx, axis=1)                           # length regulator
    spk = jnp.repeat(spk_emb[:, None, :], T_reg, axis=1)
    x = jnp.concatenate([x, spk], axis=2)

    out = bilstm_packed(x, p['lstm'], rev_idx)                        # (B, T_reg, 2*rnn)
    T_out = valid_mask.shape[1]
    out = out[:, :T_out, :]
    out = jnp.where(valid_mask[..., None], out, padding_value)        # pad_packed_sequence

    D = out.shape[-1]
    mel_pre = fused_matmul(out.reshape(B * T_out, D), p['lin']['w'],
                           bias=p['lin']['b']).reshape(B, T_out, -1)

    post = cbhg(mel_pre, p['postnet'])                                # (B, T_out, 2*postnet)
    post = fused_matmul(post.reshape(B * T_out, post.shape[-1]),
                        p['post_proj']).reshape(B, T_out, -1)

    x_out = _pad_time(jnp.transpose(mel_pre, (0, 2, 1)), max_len, padding_value)
    x_post = _pad_time(jnp.transpose(post, (0, 2, 1)), max_len, padding_value)
    return x_out, x_post


def _build_length_regulator_index(dur):
    """Host-side LengthRegulator.build_index (output length is data-dependent)."""
    # TODO(synk): data-dependent output length keeps this on the host (numpy).
    dur_np = np.maximum(np.asarray(dur, dtype=np.float64), 0.0)
    tot = np.cumsum(dur_np, axis=1).astype(np.int64)
    max_dur = int(tot.max())
    B, T = dur_np.shape
    index = np.zeros((B, max_dur), dtype=np.int32)
    for i in range(B):
        pos = 0
        for j in range(T):
            pos1 = int(tot[i, j])
            index[i, pos:pos1] = j
            pos = pos1
    return index


def forward_tacotron_forward(p, cfg, tokens, mel, dur, spk_emb, mel_lens, pitch, energy):
    padding_value = float(cfg['padding_value'])

    dur_hat, pitch_hat, energy_hat, h = _pre_lr_jit(
        p, tokens, spk_emb, pitch, energy,
        float(cfg['pitch_strength']), float(cfg['energy_strength']))

    lr_index = _build_length_regulator_index(dur)
    _, T_reg = lr_index.shape

    lens_np = np.asarray(mel_lens).astype(np.int64)
    t_idx = np.arange(T_reg)[None, :]
    rev = np.where(t_idx < lens_np[:, None], lens_np[:, None] - 1 - t_idx, t_idx)
    rev_idx = np.clip(rev, 0, T_reg - 1).astype(np.int32)
    T_out = int(lens_np.max())
    valid = np.arange(T_out)[None, :] < lens_np[:, None]

    x_out, x_post = _post_lr_jit(p, h, spk_emb,
                                 jnp.asarray(lr_index), jnp.asarray(rev_idx),
                                 jnp.asarray(valid),
                                 int(mel.shape[2]), padding_value)
    return x_out, x_post, dur_hat, pitch_hat, energy_hat


# ----------------------------------------------------------------------------
# Deterministic parameter initialization
# ----------------------------------------------------------------------------

class KeyGen:
    def __init__(self, seed=0):
        self._key = jax.random.PRNGKey(seed)

    def __call__(self):
        self._key, sub = jax.random.split(self._key)
        return sub


def _w(kg, shape):
    fan = int(np.prod(shape[1:])) if len(shape) > 1 else shape[0]
    return jax.random.normal(kg(), shape, jnp.float32) / np.sqrt(max(fan, 1))


def init_linear(kg, din, dout, bias=True):
    p = {'w': _w(kg, (din, dout))}
    p['b'] = 0.01 * jax.random.normal(kg(), (dout,), jnp.float32) if bias else None
    return p


def init_bnconv(kg, cin, cout, k):
    return {'weight': _w(kg, (cout, cin, k)),
            'gamma': 1.0 + 0.1 * jax.random.normal(kg(), (cout,), jnp.float32),
            'beta': 0.1 * jax.random.normal(kg(), (cout,), jnp.float32),
            'running_mean': jnp.zeros((cout,), jnp.float32),
            'running_var': jnp.ones((cout,), jnp.float32)}


def init_gru(kg, din, H):
    p = {}
    for d in ('f', 'b'):
        p['wih_' + d] = _w(kg, (3 * H, din))
        p['whh_' + d] = _w(kg, (3 * H, H))
        p['bih_' + d] = 0.01 * jax.random.normal(kg(), (3 * H,), jnp.float32)
        p['bhh_' + d] = 0.01 * jax.random.normal(kg(), (3 * H,), jnp.float32)
    return p


def init_lstm(kg, din, H):
    p = {}
    for d in ('f', 'b'):
        p['wih_' + d] = _w(kg, (4 * H, din))
        p['whh_' + d] = _w(kg, (4 * H, H))
        p['bih_' + d] = 0.01 * jax.random.normal(kg(), (4 * H,), jnp.float32)
        p['bhh_' + d] = 0.01 * jax.random.normal(kg(), (4 * H,), jnp.float32)
    return p


def init_highway(kg, size):
    return {'w1': _w(kg, (size, size)), 'b1': jnp.zeros((size,), jnp.float32),
            'w2': _w(kg, (size, size)),
            'b2': 0.01 * jax.random.normal(kg(), (size,), jnp.float32)}


def init_cbhg(kg, K, in_channels, channels, proj_channels, num_highways):
    p = {'bank': [init_bnconv(kg, in_channels, channels, k) for k in range(1, K + 1)],
         'proj1': init_bnconv(kg, K * channels, proj_channels[0], 3),
         'proj2': init_bnconv(kg, proj_channels[0], proj_channels[1], 3)}
    p['pre_highway'] = _w(kg, (proj_channels[-1], channels)) if proj_channels[-1] != channels else None
    p['highways'] = [init_highway(kg, channels) for _ in range(num_highways)]
    p['rnn'] = init_gru(kg, channels, channels)
    return p


def init_series_predictor(kg, num_chars, emb_dim, spk_dims, conv_dims, rnn_dims):
    return {'embedding': 0.3 * jax.random.normal(kg(), (num_chars, emb_dim), jnp.float32),
            'convs': [init_bnconv(kg, emb_dim + spk_dims, conv_dims, 5),
                      init_bnconv(kg, conv_dims, conv_dims, 5),
                      init_bnconv(kg, conv_dims, conv_dims, 5)],
            'rnn': init_gru(kg, conv_dims, rnn_dims),
            'lin': init_linear(kg, 2 * rnn_dims, 1)}


def init_forward_tacotron(kg, cfg):
    p = {'embedding': 0.3 * jax.random.normal(kg(), (cfg['num_chars'], cfg['embed_dims']), jnp.float32)}
    p['dur_pred'] = init_series_predictor(kg, cfg['num_chars'], cfg['series_embed_dims'],
                                          cfg['speaker_embed_dims'], cfg['durpred_conv_dims'],
                                          cfg['durpred_rnn_dims'])
    p['pitch_pred'] = init_series_predictor(kg, cfg['num_chars'], cfg['series_embed_dims'],
                                            cfg['speaker_embed_dims'], cfg['pitch_conv_dims'],
                                            cfg['pitch_rnn_dims'])
    p['energy_pred'] = init_series_predictor(kg, cfg['num_chars'], cfg['series_embed_dims'],
                                             cfg['speaker_embed_dims'], cfg['energy_conv_dims'],
                                             cfg['energy_rnn_dims'])
    p['prenet'] = init_cbhg(kg, cfg['prenet_k'], cfg['embed_dims'], cfg['prenet_dims'],
                            [cfg['prenet_dims'], cfg['embed_dims']], cfg['prenet_num_highways'])
    p['lstm'] = init_lstm(kg, 2 * cfg['prenet_dims'] + cfg['speaker_embed_dims'], cfg['rnn_dims'])
    p['lin'] = init_linear(kg, 2 * cfg['rnn_dims'], cfg['n_mels'])
    p['postnet'] = init_cbhg(kg, cfg['postnet_k'], cfg['n_mels'], cfg['postnet_dims'],
                             [cfg['postnet_dims'], cfg['n_mels']], cfg['postnet_num_highways'])
    p['post_proj'] = _w(kg, (2 * cfg['postnet_dims'], cfg['n_mels']))
    p['pitch_proj'] = {'weight': _w(kg, (2 * cfg['prenet_dims'], 1, 3)),
                       'bias': 0.01 * jax.random.normal(kg(), (2 * cfg['prenet_dims'],), jnp.float32)}
    p['energy_proj'] = {'weight': _w(kg, (2 * cfg['prenet_dims'], 1, 3)),
                        'bias': 0.01 * jax.random.normal(kg(), (2 * cfg['prenet_dims'],), jnp.float32)}
    return p


# ----------------------------------------------------------------------------
# Main
# ----------------------------------------------------------------------------

if __name__ == "__main__":
    cfg = dict(
        embed_dims=32, series_embed_dims=16, num_chars=30,
        durpred_conv_dims=32, durpred_rnn_dims=16, durpred_dropout=0.5,
        pitch_conv_dims=32, pitch_rnn_dims=16, pitch_dropout=0.5, pitch_strength=1.0,
        energy_conv_dims=32, energy_rnn_dims=16, energy_dropout=0.5, energy_strength=1.0,
        rnn_dims=32, prenet_dims=32, prenet_k=4, prenet_num_highways=2, prenet_dropout=0.5,
        postnet_dims=32, postnet_k=4, postnet_num_highways=2, postnet_dropout=0.5,
        n_mels=20, speaker_embed_dims=16, padding_value=-11.5129,
    )

    params = init_forward_tacotron(KeyGen(0), cfg)

    key = jax.random.PRNGKey(0)
    k1, k2, k3, k4, k5, k6 = jax.random.split(key, 6)
    B, T = 2, 8
    tokens = jax.random.randint(k1, (B, T), 0, cfg['num_chars'])
    dur = jax.random.randint(k2, (B, T), 1, 4).astype(jnp.float32)
    mel_lens = jnp.sum(dur, axis=1).astype(jnp.int32)          # consistent with durations
    mel_T = int(np.asarray(mel_lens).max()) + 2                # exercise the final padding
    mel = jax.random.normal(k3, (B, cfg['n_mels'], mel_T), jnp.float32)
    spk_emb = jax.random.normal(k4, (B, cfg['speaker_embed_dims']), jnp.float32)
    pitch = jax.random.normal(k5, (B, T), jnp.float32)
    energy = jax.random.normal(k6, (B, T), jnp.float32)

    outs = forward_tacotron_forward(params, cfg, tokens, mel, dur, spk_emb,
                                    mel_lens, pitch, energy)
    for o in outs:
        jax.block_until_ready(o)

    x_out, x_post, dur_hat, pitch_hat, energy_hat = outs
    assert x_out.shape == (B, cfg['n_mels'], mel_T)
    assert x_post.shape == (B, cfg['n_mels'], mel_T)
    assert dur_hat.shape == (B, T)
    assert pitch_hat.shape == (B, 1, T)
    assert energy_hat.shape == (B, 1, T)
    assert all(bool(jnp.all(jnp.isfinite(o))) for o in outs)

    print("KERNEL_OK")
</pallas_src>

<mosaic_0001>
module attributes {stable_mosaic.version = 11 : i64} {
  func.func @_mm_bias_affine_kernel(%arg0: i32, %arg1: memref<16x256xbf16, #tpu.memory_space<vmem>>, %arg2: memref<256x128xbf16, #tpu.memory_space<vmem>>, %arg3: memref<1x128xf32, #tpu.memory_space<vmem>>, %arg4: memref<1x128xf32, #tpu.memory_space<vmem>>, %arg5: memref<1x128xf32, #tpu.memory_space<vmem>>, %arg6: memref<16x128xf32, #tpu.memory_space<vmem>>) attributes {dimension_semantics = [#tpu.dimension_semantics<parallel>], iteration_bounds = array<i64: 1>, scalar_prefetch = 0 : i64, scratch_operands = 0 : i64, tpu.core_type = #tpu.core_type<tc>, window_params = [{transform_indices = @transform_0, window_bounds = array<i64: 16, 256>}, {pipeline_mode = #tpu.pipeline_mode<synchronous>, transform_indices = @transform_1, window_bounds = array<i64: 256, 128>}, {pipeline_mode = #tpu.pipeline_mode<synchronous>, transform_indices = @transform_2, window_bounds = array<i64: 1, 128>}, {pipeline_mode = #tpu.pipeline_mode<synchronous>, transform_indices = @transform_3, window_bounds = array<i64: 1, 128>}, {pipeline_mode = #tpu.pipeline_mode<synchronous>, transform_indices = @transform_4, window_bounds = array<i64: 1, 128>}, {transform_indices = @transform_5, window_bounds = array<i64: 16, 128>}]} {
    %c0 = arith.constant 0 : index
    %c0_0 = arith.constant 0 : index
    %0 = vector.load %arg1[%c0, %c0_0] : memref<16x256xbf16, #tpu.memory_space<vmem>>, vector<16x256xbf16>
    %c0_1 = arith.constant 0 : index
    %c0_2 = arith.constant 0 : index
    %1 = vector.load %arg2[%c0_1, %c0_2] : memref<256x128xbf16, #tpu.memory_space<vmem>>, vector<256x128xbf16>
    %cst = arith.constant dense<0.000000e+00> : vector<16x128xf32>
    %2 = tpu.matmul %0, %1, %cst {dimension_numbers = #tpu.dot_dimension_numbers<[1], [0], [0], [1], [0, 0, 1, 1], [], []>} : vector<16x256xbf16>, vector<256x128xbf16>, vector<16x128xf32> -> vector<16x128xf32>
    %c0_3 = arith.constant 0 : index
    %c0_4 = arith.constant 0 : index
    %3 = vector.load %arg3[%c0_3, %c0_4] : memref<1x128xf32, #tpu.memory_space<vmem>>, vector<1x128xf32>
    %4 = vector.broadcast %3 : vector<1x128xf32> to vector<16x128xf32>
    %5 = arith.addf %2, %4 : vector<16x128xf32>
    %cst_5 = arith.constant 0.000000e+00 : f32
    %6 = vector.broadcast %cst_5 : f32 to vector<16x128xf32>
    %7 = arith.maximumf %5, %6 : vector<16x128xf32>
    %c0_6 = arith.constant 0 : index
    %c0_7 = arith.constant 0 : index
    %8 = vector.load %arg4[%c0_6, %c0_7] : memref<1x128xf32, #tpu.memory_space<vmem>>, vector<1x128xf32>
    %9 = vector.broadcast %8 : vector<1x128xf32> to vector<16x128xf32>
    %10 = arith.mulf %7, %9 : vector<16x128xf32>
    %c0_8 = arith.constant 0 : index
    %c0_9 = arith.constant 0 : index
    %11 = vector.load %arg5[%c0_8, %c0_9] : memref<1x128xf32, #tpu.memory_space<vmem>>, vector<1x128xf32>
    %12 = vector.broadcast %11 : vector<1x128xf32> to vector<16x128xf32>
    %13 = arith.addf %10, %12 : vector<16x128xf32>
    %c0_10 = arith.constant 0 : index
    %c0_11 = arith.constant 0 : index
    %14 = vector.load %arg6[%c0_10, %c0_11] : memref<16x128xf32, #tpu.memory_space<vmem>>, vector<16x128xf32>
    tpu.vector_store %arg6[%c0_10, %c0_11], %13 {strides = array<i32>} : memref<16x128xf32, #tpu.memory_space<vmem>>, vector<16x128xf32>,
    return
  }
  func.func @transform_0(%arg0: i32) -> (i32, i32) {
    %c0_i32 = arith.constant 0 : i32
    %c0_i32_0 = arith.constant 0 : i32
    return %arg0, %c0_i32 : i32, i32
  }
  func.func @transform_1(%arg0: i32) -> (i32, i32) {
    %c0_i32 = arith.constant 0 : i32
    %c0_i32_0 = arith.constant 0 : i32
    %c0_i32_1 = arith.constant 0 : i32
    return %c0_i32, %c0_i32_0 : i32, i32
  }
  func.func @transform_2(%arg0: i32) -> (i32, i32) {
    %c0_i32 = arith.constant 0 : i32
    %c0_i32_0 = arith.constant 0 : i32
    %c0_i32_1 = arith.constant 0 : i32
    return %c0_i32, %c0_i32_0 : i32, i32
  }
  func.func @transform_3(%arg0: i32) -> (i32, i32) {
    %c0_i32 = arith.constant 0 : i32
    %c0_i32_0 = arith.constant 0 : i32
    %c0_i32_1 = arith.constant 0 : i32
    return %c0_i32, %c0_i32_0 : i32, i32
  }
  func.func @transform_4(%arg0: i32) -> (i32, i32) {
    %c0_i32 = arith.constant 0 : i32
    %c0_i32_0 = arith.constant 0 : i32
    %c0_i32_1 = arith.constant 0 : i32
    return %c0_i32, %c0_i32_0 : i32, i32
  }
  func.func @transform_5(%arg0: i32) -> (i32, i32) {
    %c0_i32 = arith.constant 0 : i32
    %c0_i32_0 = arith.constant 0 : i32
    return %arg0, %c0_i32 : i32, i32
  }
}

module attributes {stable_mosaic.version = 11 : i64} {
  func.func @_mm_bias_kernel(%arg0: i32, %arg1: memref<16x128xbf16, #tpu.memory_space<vmem>>, %arg2: memref<128x768xbf16, #tpu.memory_space<vmem>>, %arg3: memref<1x768xf32, #tpu.memory_space<vmem>>, %arg4: memref<16x768xf32, #tpu.memory_space<vmem>>) attributes {dimension_semantics = [#tpu.dimension_semantics<parallel>], iteration_bounds = array<i64: 1>, scalar_prefetch = 0 : i64, scratch_operands = 0 : i64, tpu.core_type = #tpu.core_type<tc>, window_params = [{transform_indices = @transform_0, window_bounds = array<i64: 16, 128>}, {pipeline_mode = #tpu.pipeline_mode<synchronous>, transform_indices = @transform_1, window_bounds = array<i64: 128, 768>}, {pipeline_mode = #tpu.pipeline_mode<synchronous>, transform_indices = @transform_2, window_bounds = array<i64: 1, 768>}, {transform_indices = @transform_3, window_bounds = array<i64: 16, 768>}]} {
    %c0 = arith.constant 0 : index
    %c0_0 = arith.constant 0 : index
    %0 = vector.load %arg1[%c0, %c0_0] : memref<16x128xbf16, #tpu.memory_space<vmem>>, vector<16x128xbf16>
    %c0_1 = arith.constant 0 : index
    %c0_2 = arith.constant 0 : index
    %1 = vector.load %arg2[%c0_1, %c0_2] : memref<128x768xbf16, #tpu.memory_space<vmem>>, vector<128x768xbf16>
    %cst = arith.constant dense<0.000000e+00> : vector<16x768xf32>
    %2 = tpu.matmul %0, %1, %cst {dimension_numbers = #tpu.dot_dimension_numbers<[1], [0], [0], [1], [0, 0, 1, 1], [], []>} : vector<16x128xbf16>, vector<128x768xbf16>, vector<16x768xf32> -> vector<16x768xf32>
    %c0_3 = arith.constant 0 : index
    %c0_4 = arith.constant 0 : index
    %3 = vector.load %arg3[%c0_3, %c0_4] : memref<1x768xf32, #tpu.memory_space<vmem>>, vector<1x768xf32>
    %4 = vector.broadcast %3 : vector<1x768xf32> to vector<16x768xf32>
    %5 = arith.addf %2, %4 : vector<16x768xf32>
    %c0_5 = arith.constant 0 : index
    %c0_6 = arith.constant 0 : index
    %6 = vector.load %arg4[%c0_5, %c0_6] : memref<16x768xf32, #tpu.memory_space<vmem>>, vector<16x768xf32>
    tpu.vector_store %arg4[%c0_5, %c0_6], %5 {strides = array<i32>} : memref<16x768xf32, #tpu.memory_space<vmem>>, vector<16x768xf32>,
    return
  }
  func.func @transform_0(%arg0: i32) -> (i32, i32) {
    %c0_i32 = arith.constant 0 : i32
    %c0_i32_0 = arith.constant 0 : i32
    return %arg0, %c0_i32 : i32, i32
  }
  func.func @transform_1(%arg0: i32) -> (i32, i32) {
    %c0_i32 = arith.constant 0 : i32
    %c0_i32_0 = arith.constant 0 : i32
    %c0_i32_1 = arith.constant 0 : i32
    return %c0_i32, %c0_i32_0 : i32, i32
  }
  func.func @transform_2(%arg0: i32) -> (i32, i32) {
    %c0_i32 = arith.constant 0 : i32
    %c0_i32_0 = arith.constant 0 : i32
    %c0_i32_1 = arith.constant 0 : i32
    return %c0_i32, %c0_i32_0 : i32, i32
  }
  func.func @transform_3(%arg0: i32) -> (i32, i32) {
    %c0_i32 = arith.constant 0 : i32
    %c0_i32_0 = arith.constant 0 : i32
    return %arg0, %c0_i32 : i32, i32
  }
}

module attributes {stable_mosaic.version = 11 : i64} {
  func.func @_gru_kernel(%arg0: i32, %arg1: memref<8x2x768xf32, #tpu.memory_space<vmem>>, %arg2: memref<256x768xf32, #tpu.memory_space<vmem>>, %arg3: memref<1x768xf32, #tpu.memory_space<vmem>>, %arg4: memref<8x2x256xf32, #tpu.memory_space<vmem>>, %arg5: memref<2x256xf32, #tpu.memory_space<vmem>>) attributes {dimension_semantics = [#tpu.dimension_semantics<arbitrary>], iteration_bounds = array<i64: 1>, scalar_prefetch = 0 : i64, scratch_operands = 1 : i64, tpu.core_type = #tpu.core_type<tc>, window_params = [{transform_indices = @transform_0, window_bounds = array<i64: 8, 2, 768>}, {pipeline_mode = #tpu.pipeline_mode<synchronous>, transform_indices = @transform_1, window_bounds = array<i64: 256, 768>}, {pipeline_mode = #tpu.pipeline_mode<synchronous>, transform_indices = @transform_2, window_bounds = array<i64: 1, 768>}, {transform_indices = @transform_3, window_bounds = array<i64: 8, 2, 256>}]} {
    %c0_i32 = arith.constant 0 : i32
    %0 = arith.cmpi eq, %arg0, %c0_i32 : i32
    %1 = arith.extui %0 : i1 to i32
    %c0_i32_0 = arith.constant 0 : i32
    %2 = arith.cmpi ne, %1, %c0_i32_0 : i32
    scf.if %2 {
      %cst = arith.constant 0.000000e+00 : f32
      %7 = vector.broadcast %cst : f32 to vector<2x256xf32>
      %c0_6 = arith.constant 0 : index
      %c0_7 = arith.constant 0 : index
      %8 = vector.load %arg5[%c0_6, %c0_7] : memref<2x256xf32, #tpu.memory_space<vmem>>, vector<2x256xf32>
      tpu.vector_store %arg5[%c0_6, %c0_7], %7 {strides = array<i32>} : memref<2x256xf32, #tpu.memory_space<vmem>>, vector<2x256xf32>,
    } else {
    }
    %c0 = arith.constant 0 : index
    %c0_1 = arith.constant 0 : index
    %3 = vector.load %arg5[%c0, %c0_1] : memref<2x256xf32, #tpu.memory_space<vmem>>, vector<2x256xf32>
    %c0_i32_2 = arith.constant 0 : i32
    %c8_i32 = arith.constant 8 : i32
    %4 = arith.addi %c0_i32_2, %c8_i32 : i32
    %c1_i32 = arith.constant 1 : i32
    %5 = scf.for %arg6 = %c0_i32_2 to %4 step %c1_i32 iter_args(%arg7 = %3) -> (vector<2x256xf32>)  : i32 {
      %c0_6 = arith.constant 0 : index
      %c0_7 = arith.constant 0 : index
      %7 = vector.load %arg2[%c0_6, %c0_7] : memref<256x768xf32, #tpu.memory_space<vmem>>, vector<256x768xf32>
      %cst = arith.constant dense<0.000000e+00> : vector<2x768xf32>
      %8 = tpu.matmul %arg7, %7, %cst {dimension_numbers = #tpu.dot_dimension_numbers<[1], [0], [0], [1], [0, 0, 1, 1], [], []>} : vector<2x256xf32>, vector<256x768xf32>, vector<2x768xf32> -> vector<2x768xf32>
      %c0_8 = arith.constant 0 : index
      %c0_9 = arith.constant 0 : index
      %9 = vector.load %arg3[%c0_8, %c0_9] : memref<1x768xf32, #tpu.memory_space<vmem>>, vector<1x768xf32>
      %10 = vector.broadcast %9 : vector<1x768xf32> to vector<2x768xf32>
      %11 = arith.addf %8, %10 : vector<2x768xf32>
      %12 = arith.index_cast %arg6 : i32 to index
      %c0_10 = arith.constant 0 : index
      %c0_11 = arith.constant 0 : index
      %13 = vector.load %arg1[%12, %c0_10, %c0_11] : memref<8x2x768xf32, #tpu.memory_space<vmem>>, vector<1x2x768xf32>
      %14 = vector.shape_cast %13 : vector<1x2x768xf32> to vector<2x768xf32>
      %15 = vector.extract_strided_slice %14 {offsets = [0, 0], sizes = [2, 256], strides = [1, 1]} : vector<2x768xf32> to vector<2x256xf32>
      %16 = vector.extract_strided_slice %11 {offsets = [0, 0], sizes = [2, 256], strides = [1, 1]} : vector<2x768xf32> to vector<2x256xf32>
      %17 = arith.addf %15, %16 : vector<2x256xf32>
      %18 = arith.negf %17 : vector<2x256xf32>
      %19 = math.exp %18 : vector<2x256xf32>
      %cst_12 = arith.constant 1.000000e+00 : f32
      %20 = vector.broadcast %cst_12 : f32 to vector<2x256xf32>
      %21 = arith.addf %20, %19 : vector<2x256xf32>
      %22 = arith.divf %20, %21 : vector<2x256xf32>
      %23 = vector.extract_strided_slice %14 {offsets = [0, 256], sizes = [2, 256], strides = [1, 1]} : vector<2x768xf32> to vector<2x256xf32>
      %24 = vector.extract_strided_slice %11 {offsets = [0, 256], sizes = [2, 256], strides = [1, 1]} : vector<2x768xf32> to vector<2x256xf32>
      %25 = arith.addf %23, %24 : vector<2x256xf32>
      %26 = arith.negf %25 : vector<2x256xf32>
      %27 = math.exp %26 : vector<2x256xf32>
      %cst_13 = arith.constant 1.000000e+00 : f32
      %28 = vector.broadcast %cst_13 : f32 to vector<2x256xf32>
      %29 = arith.addf %28, %27 : vector<2x256xf32>
      %30 = arith.divf %28, %29 : vector<2x256xf32>
      %31 = vector.extract_strided_slice %14 {offsets = [0, 512], sizes = [2, 256], strides = [1, 1]} : vector<2x768xf32> to vector<2x256xf32>
      %32 = vector.extract_strided_slice %11 {offsets = [0, 512], sizes = [2, 256], strides = [1, 1]} : vector<2x768xf32> to vector<2x256xf32>
      %33 = arith.mulf %22, %32 : vector<2x256xf32>
      %34 = arith.addf %31, %33 : vector<2x256xf32>
      %35 = math.tanh %34 : vector<2x256xf32>
      %cst_14 = arith.constant 1.000000e+00 : f32
      %36 = vector.broadcast %cst_14 : f32 to vector<2x256xf32>
      %37 = arith.subf %36, %30 : vector<2x256xf32>
      %38 = arith.mulf %37, %35 : vector<2x256xf32>
      %39 = arith.mulf %30, %arg7 : vector<2x256xf32>
      %40 = arith.addf %38, %39 : vector<2x256xf32>
      %41 = arith.index_cast %arg6 : i32 to index
      %c0_15 = arith.constant 0 : index
      %c0_16 = arith.constant 0 : index
      %42 = vector.load %arg4[%41, %c0_15, %c0_16] : memref<8x2x256xf32, #tpu.memory_space<vmem>>, vector<1x2x256xf32>
      %43 = vector.shape_cast %42 : vector<1x2x256xf32> to vector<2x256xf32>
      %44 = vector.shape_cast %40 : vector<2x256xf32> to vector<1x2x256xf32>
      tpu.vector_store %arg4[%41, %c0_15, %c0_16], %44 {strides = array<i32>} : memref<8x2x256xf32, #tpu.memory_space<vmem>>, vector<1x2x256xf32>,
      scf.yield %40 : vector<2x256xf32>
    }
    %c8_i32_3 = arith.constant 8 : i32
    %c0_4 = arith.constant 0 : index
    %c0_5 = arith.constant 0 : index
    %6 = vector.load %arg5[%c0_4, %c0_5] : memref<2x256xf32, #tpu.memory_space<vmem>>, vector<2x256xf32>
    tpu.vector_store %arg5[%c0_4, %c0_5], %5 {strides = array<i32>} : memref<2x256xf32, #tpu.memory_space<vmem>>, vector<2x256xf32>,
    return
  }
  func.func @transform_0(%arg0: i32) -> (i32, i32, i32) {
    %c0_i32 = arith.constant 0 : i32
    %c0_i32_0 = arith.constant 0 : i32
    %c0_i32_1 = arith.constant 0 : i32
    return %arg0, %c0_i32, %c0_i32_0 : i32, i32, i32
  }
  func.func @transform_1(%arg0: i32) -> (i32, i32) {
    %c0_i32 = arith.constant 0 : i32
    %c0_i32_0 = arith.constant 0 : i32
    %c0_i32_1 = arith.constant 0 : i32
    return %c0_i32, %c0_i32_0 : i32, i32
  }
  func.func @transform_2(%arg0: i32) -> (i32, i32) {
    %c0_i32 = arith.constant 0 : i32
    %c0_i32_0 = arith.constant 0 : i32
    %c0_i32_1 = arith.constant 0 : i32
    return %c0_i32, %c0_i32_0 : i32, i32
  }
  func.func @transform_3(%arg0: i32) -> (i32, i32, i32) {
    %c0_i32 = arith.constant 0 : i32
    %c0_i32_0 = arith.constant 0 : i32
    %c0_i32_1 = arith.constant 0 : i32
    return %arg0, %c0_i32, %c0_i32_0 : i32, i32, i32
  }
}

module attributes {stable_mosaic.version = 11 : i64} {
  func.func @_mm_bias_kernel(%arg0: i32, %arg1: memref<16x128xbf16, #tpu.memory_space<vmem>>, %arg2: memref<128x128xbf16, #tpu.memory_space<vmem>>, %arg3: memref<1x128xf32, #tpu.memory_space<vmem>>, %arg4: memref<16x128xf32, #tpu.memory_space<vmem>>) attributes {dimension_semantics = [#tpu.dimension_semantics<parallel>], iteration_bounds = array<i64: 1>, scalar_prefetch = 0 : i64, scratch_operands = 0 : i64, tpu.core_type = #tpu.core_type<tc>, window_params = [{transform_indices = @transform_0, window_bounds = array<i64: 16, 128>}, {pipeline_mode = #tpu.pipeline_mode<synchronous>, transform_indices = @transform_1, window_bounds = array<i64: 128, 128>}, {pipeline_mode = #tpu.pipeline_mode<synchronous>, transform_indices = @transform_2, window_bounds = array<i64: 1, 128>}, {transform_indices = @transform_3, window_bounds = array<i64: 16, 128>}]} {
    %c0 = arith.constant 0 : index
    %c0_0 = arith.constant 0 : index
    %0 = vector.load %arg1[%c0, %c0_0] : memref<16x128xbf16, #tpu.memory_space<vmem>>, vector<16x128xbf16>
    %c0_1 = arith.constant 0 : index
    %c0_2 = arith.constant 0 : index
    %1 = vector.load %arg2[%c0_1, %c0_2] : memref<128x128xbf16, #tpu.memory_space<vmem>>, vector<128x128xbf16>
    %cst = arith.constant dense<0.000000e+00> : vector<16x128xf32>
    %2 = tpu.matmul %0, %1, %cst {dimension_numbers = #tpu.dot_dimension_numbers<[1], [0], [0], [1], [0, 0, 1, 1], [], []>} : vector<16x128xbf16>, vector<128x128xbf16>, vector<16x128xf32> -> vector<16x128xf32>
    %c0_3 = arith.constant 0 : index
    %c0_4 = arith.constant 0 : index
    %3 = vector.load %arg3[%c0_3, %c0_4] : memref<1x128xf32, #tpu.memory_space<vmem>>, vector<1x128xf32>
    %4 = vector.broadcast %3 : vector<1x128xf32> to vector<16x128xf32>
    %5 = arith.addf %2, %4 : vector<16x128xf32>
    %c0_5 = arith.constant 0 : index
    %c0_6 = arith.constant 0 : index
    %6 = vector.load %arg4[%c0_5, %c0_6] : memref<16x128xf32, #tpu.memory_space<vmem>>, vector<16x128xf32>
    tpu.vector_store %arg4[%c0_5, %c0_6], %5 {strides = array<i32>} : memref<16x128xf32, #tpu.memory_space<vmem>>, vector<16x128xf32>,
    return
  }
  func.func @transform_0(%arg0: i32) -> (i32, i32) {
    %c0_i32 = arith.constant 0 : i32
    %c0_i32_0 = arith.constant 0 : i32
    return %arg0, %c0_i32 : i32, i32
  }
  func.func @transform_1(%arg0: i32) -> (i32, i32) {
    %c0_i32 = arith.constant 0 : i32
    %c0_i32_0 = arith.constant 0 : i32
    %c0_i32_1 = arith.constant 0 : i32
    return %c0_i32, %c0_i32_0 : i32, i32
  }
  func.func @transform_2(%arg0: i32) -> (i32, i32) {
    %c0_i32 = arith.constant 0 : i32
    %c0_i32_0 = arith.constant 0 : i32
    %c0_i32_1 = arith.constant 0 : i32
    return %c0_i32, %c0_i32_0 : i32, i32
  }
  func.func @transform_3(%arg0: i32) -> (i32, i32) {
    %c0_i32 = arith.constant 0 : i32
    %c0_i32_0 = arith.constant 0 : i32
    return %arg0, %c0_i32 : i32, i32
  }
}

module attributes {stable_mosaic.version = 11 : i64} {
  func.func @_mm_bias_affine_kernel(%arg0: i32, %arg1: memref<16x128xbf16, #tpu.memory_space<vmem>>, %arg2: memref<128x128xbf16, #tpu.memory_space<vmem>>, %arg3: memref<1x128xf32, #tpu.memory_space<vmem>>, %arg4: memref<1x128xf32, #tpu.memory_space<vmem>>, %arg5: memref<1x128xf32, #tpu.memory_space<vmem>>, %arg6: memref<16x128xf32, #tpu.memory_space<vmem>>) attributes {dimension_semantics = [#tpu.dimension_semantics<parallel>], iteration_bounds = array<i64: 1>, scalar_prefetch = 0 : i64, scratch_operands = 0 : i64, tpu.core_type = #tpu.core_type<tc>, window_params = [{transform_indices = @transform_0, window_bounds = array<i64: 16, 128>}, {pipeline_mode = #tpu.pipeline_mode<synchronous>, transform_indices = @transform_1, window_bounds = array<i64: 128, 128>}, {pipeline_mode = #tpu.pipeline_mode<synchronous>, transform_indices = @transform_2, window_bounds = array<i64: 1, 128>}, {pipeline_mode = #tpu.pipeline_mode<synchronous>, transform_indices = @transform_3, window_bounds = array<i64: 1, 128>}, {pipeline_mode = #tpu.pipeline_mode<synchronous>, transform_indices = @transform_4, window_bounds = array<i64: 1, 128>}, {transform_indices = @transform_5, window_bounds = array<i64: 16, 128>}]} {
    %c0 = arith.constant 0 : index
    %c0_0 = arith.constant 0 : index
    %0 = vector.load %arg1[%c0, %c0_0] : memref<16x128xbf16, #tpu.memory_space<vmem>>, vector<16x128xbf16>
    %c0_1 = arith.constant 0 : index
    %c0_2 = arith.constant 0 : index
    %1 = vector.load %arg2[%c0_1, %c0_2] : memref<128x128xbf16, #tpu.memory_space<vmem>>, vector<128x128xbf16>
    %cst = arith.constant dense<0.000000e+00> : vector<16x128xf32>
    %2 = tpu.matmul %0, %1, %cst {dimension_numbers = #tpu.dot_dimension_numbers<[1], [0], [0], [1], [0, 0, 1, 1], [], []>} : vector<16x128xbf16>, vector<128x128xbf16>, vector<16x128xf32> -> vector<16x128xf32>
    %c0_3 = arith.constant 0 : index
    %c0_4 = arith.constant 0 : index
    %3 = vector.load %arg3[%c0_3, %c0_4] : memref<1x128xf32, #tpu.memory_space<vmem>>, vector<1x128xf32>
    %4 = vector.broadcast %3 : vector<1x128xf32> to vector<16x128xf32>
    %5 = arith.addf %2, %4 : vector<16x128xf32>
    %cst_5 = arith.constant 0.000000e+00 : f32
    %6 = vector.broadcast %cst_5 : f32 to vector<16x128xf32>
    %7 = arith.maximumf %5, %6 : vector<16x128xf32>
    %c0_6 = arith.constant 0 : index
    %c0_7 = arith.constant 0 : index
    %8 = vector.load %arg4[%c0_6, %c0_7] : memref<1x128xf32, #tpu.memory_space<vmem>>, vector<1x128xf32>
    %9 = vector.broadcast %8 : vector<1x128xf32> to vector<16x128xf32>
    %10 = arith.mulf %7, %9 : vector<16x128xf32>
    %c0_8 = arith.constant 0 : index
    %c0_9 = arith.constant 0 : index
    %11 = vector.load %arg5[%c0_8, %c0_9] : memref<1x128xf32, #tpu.memory_space<vmem>>, vector<1x128xf32>
    %12 = vector.broadcast %11 : vector<1x128xf32> to vector<16x128xf32>
    %13 = arith.addf %10, %12 : vector<16x128xf32>
    %c0_10 = arith.constant 0 : index
    %c0_11 = arith.constant 0 : index
    %14 = vector.load %arg6[%c0_10, %c0_11] : memref<16x128xf32, #tpu.memory_space<vmem>>, vector<16x128xf32>
    tpu.vector_store %arg6[%c0_10, %c0_11], %13 {strides = array<i32>} : memref<16x128xf32, #tpu.memory_space<vmem>>, vector<16x128xf32>,
    return
  }
  func.func @transform_0(%arg0: i32) -> (i32, i32) {
    %c0_i32 = arith.constant 0 : i32
    %c0_i32_0 = arith.constant 0 : i32
    return %arg0, %c0_i32 : i32, i32
  }
  func.func @transform_1(%arg0: i32) -> (i32, i32) {
    %c0_i32 = arith.constant 0 : i32
    %c0_i32_0 = arith.constant 0 : i32
    %c0_i32_1 = arith.constant 0 : i32
    return %c0_i32, %c0_i32_0 : i32, i32
  }
  func.func @transform_2(%arg0: i32) -> (i32, i32) {
    %c0_i32 = arith.constant 0 : i32
    %c0_i32_0 = arith.constant 0 : i32
    %c0_i32_1 = arith.constant 0 : i32
    return %c0_i32, %c0_i32_0 : i32, i32
  }
  func.func @transform_3(%arg0: i32) -> (i32, i32) {
    %c0_i32 = arith.constant 0 : i32
    %c0_i32_0 = arith.constant 0 : i32
    %c0_i32_1 = arith.constant 0 : i32
    return %c0_i32, %c0_i32_0 : i32, i32
  }
  func.func @transform_4(%arg0: i32) -> (i32, i32) {
    %c0_i32 = arith.constant 0 : i32
    %c0_i32_0 = arith.constant 0 : i32
    %c0_i32_1 = arith.constant 0 : i32
    return %c0_i32, %c0_i32_0 : i32, i32
  }
  func.func @transform_5(%arg0: i32) -> (i32, i32) {
    %c0_i32 = arith.constant 0 : i32
    %c0_i32_0 = arith.constant 0 : i32
    return %arg0, %c0_i32 : i32, i32
  }
}

module attributes {stable_mosaic.version = 11 : i64} {
  func.func @_mm_bias_affine_kernel(%arg0: i32, %arg1: memref<16x384xbf16, #tpu.memory_space<vmem>>, %arg2: memref<384x128xbf16, #tpu.memory_space<vmem>>, %arg3: memref<1x128xf32, #tpu.memory_space<vmem>>, %arg4: memref<1x128xf32, #tpu.memory_space<vmem>>, %arg5: memref<1x128xf32, #tpu.memory_space<vmem>>, %arg6: memref<16x128xf32, #tpu.memory_space<vmem>>) attributes {dimension_semantics = [#tpu.dimension_semantics<parallel>], iteration_bounds = array<i64: 1>, scalar_prefetch = 0 : i64, scratch_operands = 0 : i64, tpu.core_type = #tpu.core_type<tc>, window_params = [{transform_indices = @transform_0, window_bounds = array<i64: 16, 384>}, {pipeline_mode = #tpu.pipeline_mode<synchronous>, transform_indices = @transform_1, window_bounds = array<i64: 384, 128>}, {pipeline_mode = #tpu.pipeline_mode<synchronous>, transform_indices = @transform_2, window_bounds = array<i64: 1, 128>}, {pipeline_mode = #tpu.pipeline_mode<synchronous>, transform_indices = @transform_3, window_bounds = array<i64: 1, 128>}, {pipeline_mode = #tpu.pipeline_mode<synchronous>, transform_indices = @transform_4, window_bounds = array<i64: 1, 128>}, {transform_indices = @transform_5, window_bounds = array<i64: 16, 128>}]} {
    %c0 = arith.constant 0 : index
    %c0_0 = arith.constant 0 : index
    %0 = vector.load %arg1[%c0, %c0_0] : memref<16x384xbf16, #tpu.memory_space<vmem>>, vector<16x384xbf16>
    %c0_1 = arith.constant 0 : index
    %c0_2 = arith.constant 0 : index
    %1 = vector.load %arg2[%c0_1, %c0_2] : memref<384x128xbf16, #tpu.memory_space<vmem>>, vector<384x128xbf16>
    %cst = arith.constant dense<0.000000e+00> : vector<16x128xf32>
    %2 = tpu.matmul %0, %1, %cst {dimension_numbers = #tpu.dot_dimension_numbers<[1], [0], [0], [1], [0, 0, 1, 1], [], []>} : vector<16x384xbf16>, vector<384x128xbf16>, vector<16x128xf32> -> vector<16x128xf32>
    %c0_3 = arith.constant 0 : index
    %c0_4 = arith.constant 0 : index
    %3 = vector.load %arg3[%c0_3, %c0_4] : memref<1x128xf32, #tpu.memory_space<vmem>>, vector<1x128xf32>
    %4 = vector.broadcast %3 : vector<1x128xf32> to vector<16x128xf32>
    %5 = arith.addf %2, %4 : vector<16x128xf32>
    %cst_5 = arith.constant 0.000000e+00 : f32
    %6 = vector.broadcast %cst_5 : f32 to vector<16x128xf32>
    %7 = arith.maximumf %5, %6 : vector<16x128xf32>
    %c0_6 = arith.constant 0 : index
    %c0_7 = arith.constant 0 : index
    %8 = vector.load %arg4[%c0_6, %c0_7] : memref<1x128xf32, #tpu.memory_space<vmem>>, vector<1x128xf32>
    %9 = vector.broadcast %8 : vector<1x128xf32> to vector<16x128xf32>
    %10 = arith.mulf %7, %9 : vector<16x128xf32>
    %c0_8 = arith.constant 0 : index
    %c0_9 = arith.constant 0 : index
    %11 = vector.load %arg5[%c0_8, %c0_9] : memref<1x128xf32, #tpu.memory_space<vmem>>, vector<1x128xf32>
    %12 = vector.broadcast %11 : vector<1x128xf32> to vector<16x128xf32>
    %13 = arith.addf %10, %12 : vector<16x128xf32>
    %c0_10 = arith.constant 0 : index
    %c0_11 = arith.constant 0 : index
    %14 = vector.load %arg6[%c0_10, %c0_11] : memref<16x128xf32, #tpu.memory_space<vmem>>, vector<16x128xf32>
    tpu.vector_store %arg6[%c0_10, %c0_11], %13 {strides = array<i32>} : memref<16x128xf32, #tpu.memory_space<vmem>>, vector<16x128xf32>,
    return
  }
  func.func @transform_0(%arg0: i32) -> (i32, i32) {
    %c0_i32 = arith.constant 0 : i32
    %c0_i32_0 = arith.constant 0 : i32
    return %arg0, %c0_i32 : i32, i32
  }
  func.func @transform_1(%arg0: i32) -> (i32, i32) {
    %c0_i32 = arith.constant 0 : i32
    %c0_i32_0 = arith.constant 0 : i32
    %c0_i32_1 = arith.constant 0 : i32
    return %c0_i32, %c0_i32_0 : i32, i32
  }
  func.func @transform_2(%arg0: i32) -> (i32, i32) {
    %c0_i32 = arith.constant 0 : i32
    %c0_i32_0 = arith.constant 0 : i32
    %c0_i32_1 = arith.constant 0 : i32
    return %c0_i32, %c0_i32_0 : i32, i32
  }
  func.func @transform_3(%arg0: i32) -> (i32, i32) {
    %c0_i32 = arith.constant 0 : i32
    %c0_i32_0 = arith.constant 0 : i32
    %c0_i32_1 = arith.constant 0 : i32
    return %c0_i32, %c0_i32_0 : i32, i32
  }
  func.func @transform_4(%arg0: i32) -> (i32, i32) {
    %c0_i32 = arith.constant 0 : i32
    %c0_i32_0 = arith.constant 0 : i32
    %c0_i32_1 = arith.constant 0 : i32
    return %c0_i32, %c0_i32_0 : i32, i32
  }
  func.func @transform_5(%arg0: i32) -> (i32, i32) {
    %c0_i32 = arith.constant 0 : i32
    %c0_i32_0 = arith.constant 0 : i32
    return %arg0, %c0_i32 : i32, i32
  }
}

module attributes {stable_mosaic.version = 11 : i64} {
  func.func @_highway_kernel(%arg0: i32, %arg1: memref<16x128xf32, #tpu.memory_space<vmem>>, %arg2: memref<128x256xf32, #tpu.memory_space<vmem>>, %arg3: memref<1x256xf32, #tpu.memory_space<vmem>>, %arg4: memref<16x128xf32, #tpu.memory_space<vmem>>) attributes {dimension_semantics = [#tpu.dimension_semantics<parallel>], iteration_bounds = array<i64: 1>, scalar_prefetch = 0 : i64, scratch_operands = 0 : i64, tpu.core_type = #tpu.core_type<tc>, window_params = [{transform_indices = @transform_0, window_bounds = array<i64: 16, 128>}, {pipeline_mode = #tpu.pipeline_mode<synchronous>, transform_indices = @transform_1, window_bounds = array<i64: 128, 256>}, {pipeline_mode = #tpu.pipeline_mode<synchronous>, transform_indices = @transform_2, window_bounds = array<i64: 1, 256>}, {transform_indices = @transform_3, window_bounds = array<i64: 16, 128>}]} {
    %c0 = arith.constant 0 : index
    %c0_0 = arith.constant 0 : index
    %0 = vector.load %arg1[%c0, %c0_0] : memref<16x128xf32, #tpu.memory_space<vmem>>, vector<16x128xf32>
    %c0_1 = arith.constant 0 : index
    %c0_2 = arith.constant 0 : index
    %1 = vector.load %arg2[%c0_1, %c0_2] : memref<128x256xf32, #tpu.memory_space<vmem>>, vector<128x256xf32>
    %cst = arith.constant dense<0.000000e+00> : vector<16x256xf32>
    %2 = tpu.matmul %0, %1, %cst {dimension_numbers = #tpu.dot_dimension_numbers<[1], [0], [0], [1], [0, 0, 1, 1], [], []>} : vector<16x128xf32>, vector<128x256xf32>, vector<16x256xf32> -> vector<16x256xf32>
    %c0_3 = arith.constant 0 : index
    %c0_4 = arith.constant 0 : index
    %3 = vector.load %arg3[%c0_3, %c0_4] : memref<1x256xf32, #tpu.memory_space<vmem>>, vector<1x256xf32>
    %4 = vector.broadcast %3 : vector<1x256xf32> to vector<16x256xf32>
    %5 = arith.addf %2, %4 : vector<16x256xf32>
    %6 = vector.extract_strided_slice %5 {offsets = [0, 0], sizes = [16, 128], strides = [1, 1]} : vector<16x256xf32> to vector<16x128xf32>
    %cst_5 = arith.constant 0.000000e+00 : f32
    %7 = vector.broadcast %cst_5 : f32 to vector<16x128xf32>
    %8 = arith.maximumf %6, %7 : vector<16x128xf32>
    %9 = vector.extract_strided_slice %5 {offsets = [0, 128], sizes = [16, 128], strides = [1, 1]} : vector<16x256xf32> to vector<16x128xf32>
    %10 = arith.negf %9 : vector<16x128xf32>
    %11 = math.exp %10 : vector<16x128xf32>
    %cst_6 = arith.constant 1.000000e+00 : f32
    %12 = vector.broadcast %cst_6 : f32 to vector<16x128xf32>
    %13 = arith.addf %12, %11 : vector<16x128xf32>
    %14 = arith.divf %12, %13 : vector<16x128xf32>
    %15 = arith.mulf %14, %8 : vector<16x128xf32>
    %cst_7 = arith.constant 1.000000e+00 : f32
    %16 = vector.broadcast %cst_7 : f32 to vector<16x128xf32>
    %17 = arith.subf %16, %14 : vector<16x128xf32>
    %18 = arith.mulf %17, %0 : vector<16x128xf32>
    %19 = arith.addf %15, %18 : vector<16x128xf32>
    %c0_8 = arith.constant 0 : index
    %c0_9 = arith.constant 0 : index
    %20 = vector.load %arg4[%c0_8, %c0_9] : memref<16x128xf32, #tpu.memory_space<vmem>>, vector<16x128xf32>
    tpu.vector_store %arg4[%c0_8, %c0_9], %19 {strides = array<i32>} : memref<16x128xf32, #tpu.memory_space<vmem>>, vector<16x128xf32>,
    return
  }
  func.func @transform_0(%arg0: i32) -> (i32, i32) {
    %c0_i32 = arith.constant 0 : i32
    %c0_i32_0 = arith.constant 0 : i32
    return %arg0, %c0_i32 : i32, i32
  }
  func.func @transform_1(%arg0: i32) -> (i32, i32) {
    %c0_i32 = arith.constant 0 : i32
    %c0_i32_0 = arith.constant 0 : i32
    %c0_i32_1 = arith.constant 0 : i32
    return %c0_i32, %c0_i32_0 : i32, i32
  }
  func.func @transform_2(%arg0: i32) -> (i32, i32) {
    %c0_i32 = arith.constant 0 : i32
    %c0_i32_0 = arith.constant 0 : i32
    %c0_i32_1 = arith.constant 0 : i32
    return %c0_i32, %c0_i32_0 : i32, i32
  }
  func.func @transform_3(%arg0: i32) -> (i32, i32) {
    %c0_i32 = arith.constant 0 : i32
    %c0_i32_0 = arith.constant 0 : i32
    return %arg0, %c0_i32 : i32, i32
  }
}

</mosaic_0001>

<llo_original>
// kernel: _pre_lr_jit.27
$region0: #{_pre_lr_jit.27}
  #allocation0 [shape = 'u32[]', space=smem, size = 0x4, offset = 0x4, fixed_abs, tag = 'smem constant byte address 0x4 - core index']
  #allocation1 [shape = 'u32[72,128]{1,0:T(1,128)}', space=vmem, size = 0x9000, scoped, tag = 'internal scratch']
  %s0 = inlined_call_operand.vmem [shape: bf16[16,256], index: 0, kind: input, shape index: {}]
  %s1 = inlined_call_operand.vmem [shape: bf16[256,128], index: 1, kind: input, shape index: {}]
  %s2 = inlined_call_operand.vmem [shape: f32[1,128], index: 2, kind: input, shape index: {}]
  %s3 = inlined_call_operand.vmem [shape: f32[1,128], index: 3, kind: input, shape index: {}]
  %s4 = inlined_call_operand.vmem [shape: f32[1,128], index: 4, kind: input, shape index: {}]
  %s5 = inlined_call_operand.vmem [shape: f32[16,128], index: 5, kind: output, shape index: {}]
  %s6 = sld [smem:[#allocation0]]
  $region30: #{_pre_lr_jit.27} parent=0
    _
  %s8 = ssub.s32 1, %s6
  %s9 = scalar_select 0, %s8, %s6
  // Predicated region
  $region2: #{_pre_lr_jit.27} parent=0 // pred_check
    _
  $region3: #{_pre_lr_jit.27} parent=0 // pred_check_branch
    %11 = sbr.rel (0) target = $region5
  $region4: #{_pre_lr_jit.27} parent=0 // pred_region
    _
  $region5: #{_pre_lr_jit.27} parent=0 // pred_fallthru
    _
  // Predicated region
  $region6: #{_pre_lr_jit.27} parent=0 // pred_check
    _
  $region7: #{_pre_lr_jit.27} parent=0 // pred_check_branch
    %13 = sbr.rel (0) target = $region9
  $region8: #{_pre_lr_jit.27} parent=0 // pred_region
    _
  $region9: #{_pre_lr_jit.27} parent=0 // pred_fallthru
    _
  // Predicated region
  $region10: #{_pre_lr_jit.27} parent=0 // pred_check
    _
  $region11: #{_pre_lr_jit.27} parent=0 // pred_check_branch
    %15 = sbr.rel (0) target = $region13
  $region12: #{_pre_lr_jit.27} parent=0 // pred_region
    _
  $region13: #{_pre_lr_jit.27} parent=0 // pred_fallthru
    _
  // Predicated region
  $region14: #{_pre_lr_jit.27} parent=0 // pred_check
    _
  $region15: #{_pre_lr_jit.27} parent=0 // pred_check_branch
    %17 = sbr.rel (0) target = $region17
  $region16: #{_pre_lr_jit.27} parent=0 // pred_region
    _
  $region17: #{_pre_lr_jit.27} parent=0 // pred_fallthru
    _
  // Predicated region
  $region18: #{_pre_lr_jit.27} parent=0 // pred_check
    _
  $region19: #{_pre_lr_jit.27} parent=0 // pred_check_branch
    %19 = sbr.rel (0) target = $region21
  $region20: #{_pre_lr_jit.27} parent=0 // pred_region
    _
  $region21: #{_pre_lr_jit.27} parent=0 // pred_fallthru
    _
  %v20 = vld [vmem:[%s0] sm:$0xff]
  %v21 = vld [vmem:[%s0 + $0x8] sm:$0xff]
  %v22 = vld [vmem:[%s1] sm:$0xf]
  %v23 = vld [vmem:[%s1 + $0x4] sm:$0xf]
  %v24 = vld [vmem:[%s1 + $0x8] sm:$0xf]
  %v25 = vld [vmem:[%s1 + $0xc] sm:$0xf]
  %v26 = vld [vmem:[%s1 + $0x10] sm:$0xf]
  %v27 = vld [vmem:[%s1 + $0x14] sm:$0xf]
  %v28 = vld [vmem:[%s1 + $0x18] sm:$0xf]
  %v29 = vld [vmem:[%s1 + $0x1c] sm:$0xf]
  %v30 = vld [vmem:[%s1 + $0x20] sm:$0xf]
  %v31 = vld [vmem:[%s1 + $0x24] sm:$0xf]
  %v32 = vld [vmem:[%s1 + $0x28] sm:$0xf]
  %v33 = vld [vmem:[%s1 + $0x2c] sm:$0xf]
  %v34 = vld [vmem:[%s1 + $0x30] sm:$0xf]
  %v35 = vld [vmem:[%s1 + $0x34] sm:$0xf]
  %v36 = vld [vmem:[%s1 + $0x38] sm:$0xf]
  %v37 = vld [vmem:[%s1 + $0x3c] sm:$0xf]
  %v38 = vld [vmem:[%s1 + $0x40] sm:$0xf]
  %v39 = vld [vmem:[%s1 + $0x44] sm:$0xf]
  %v40 = vld [vmem:[%s1 + $0x48] sm:$0xf]
  %v41 = vld [vmem:[%s1 + $0x4c] sm:$0xf]
  %v42 = vld [vmem:[%s1 + $0x50] sm:$0xf]
  %v43 = vld [vmem:[%s1 + $0x54] sm:$0xf]
  %v44 = vld [vmem:[%s1 + $0x58] sm:$0xf]
  %v45 = vld [vmem:[%s1 + $0x5c] sm:$0xf]
  %v46 = vld [vmem:[%s1 + $0x60] sm:$0xf]
  %v47 = vld [vmem:[%s1 + $0x64] sm:$0xf]
  %v48 = vld [vmem:[%s1 + $0x68] sm:$0xf]
  %v49 = vld [vmem:[%s1 + $0x6c] sm:$0xf]
  %v50 = vld [vmem:[%s1 + $0x70] sm:$0xf]
  %v51 = vld [vmem:[%s1 + $0x74] sm:$0xf]
  %v52 = vld [vmem:[%s1 + $0x78] sm:$0xf]
  %v53 = vld [vmem:[%s1 + $0x7c] sm:$0xf]
  %v54 = vld [vmem:[%s2] sm:$0x1]
  %v56 = vperm.slane %v54, 0
  %v60 = vunpack.c.l.b16 %v20
  %v61 = vunpack.c.h.b16 %v20
  %v62 = vunpack.c.l.b16 %v21
  %v63 = vunpack.c.h.b16 %v21
  %v64 = vpack.c.b16 %v62, %v60
  %v65 = vpack.c.b16 %v63, %v61
  %v100 = vunpack.c.l.b16 %v22
  %v101 = vunpack.c.l.b16 %v23
  %v102 = vunpack.c.l.b16 %v24
  %v103 = vunpack.c.l.b16 %v25
  %v104 = vunpack.c.l.b16 %v26
  %v105 = vunpack.c.l.b16 %v27
  %v106 = vunpack.c.l.b16 %v28
  %v107 = vunpack.c.l.b16 %v29
  %v108 = vunpack.c.l.b16 %v30
  %v109 = vunpack.c.l.b16 %v31
  %v110 = vunpack.c.l.b16 %v32
  %v111 = vunpack.c.l.b16 %v33
  %v112 = vunpack.c.l.b16 %v34
  %v113 = vunpack.c.l.b16 %v35
  %v114 = vunpack.c.l.b16 %v36
  %v115 = vunpack.c.l.b16 %v37
  %v116 = vunpack.c.l.b16 %v38
  %v117 = vunpack.c.l.b16 %v39
  %v118 = vunpack.c.l.b16 %v40
  %v119 = vunpack.c.l.b16 %v41
  %v120 = vunpack.c.l.b16 %v42
  %v121 = vunpack.c.l.b16 %v43
  %v122 = vunpack.c.l.b16 %v44
  %v123 = vunpack.c.l.b16 %v45
  %v124 = vunpack.c.l.b16 %v46
  %v125 = vunpack.c.l.b16 %v47
  %v126 = vunpack.c.l.b16 %v48
  %v127 = vunpack.c.l.b16 %v49
  %v128 = vunpack.c.l.b16 %v50
  %v129 = vunpack.c.l.b16 %v51
  %v130 = vunpack.c.l.b16 %v52
  %v131 = vunpack.c.l.b16 %v53
  %v132 = vpack.c.b16 %v101, %v100
  %v133 = vpack.c.b16 %v103, %v102
  %v134 = vpack.c.b16 %v105, %v104
  %v135 = vpack.c.b16 %v107, %v106
  %v136 = vpack.c.b16 %v109, %v108
  %v137 = vpack.c.b16 %v111, %v110
  %v138 = vpack.c.b16 %v113, %v112
  %v139 = vpack.c.b16 %v115, %v114
  %v140 = vpack.c.b16 %v117, %v116
  %v141 = vpack.c.b16 %v119, %v118
  %v142 = vpack.c.b16 %v121, %v120
  %v143 = vpack.c.b16 %v123, %v122
  %v144 = vpack.c.b16 %v125, %v124
  %v145 = vpack.c.b16 %v127, %v126
  %v146 = vpack.c.b16 %v129, %v128
  %v147 = vpack.c.b16 %v131, %v130
  %164 = vmatpush.bf16.msra.mxu0 %v139
  %165 = vmatpush.bf16.msra.mxu0 %v138
  %166 = vmatpush.bf16.msra.mxu0 %v137
  %167 = vmatpush.bf16.msra.mxu0 %v136
  %168 = vmatpush.bf16.msra.mxu0 %v135
  %169 = vmatpush.bf16.msra.mxu0 %v134
  %170 = vmatpush.bf16.msra.mxu0 %v133
  %171 = vmatpush.bf16.msra.mxu0 %v132
  %172 = vmatmul.bf16.gmra.mxu0 %v64
  %v173 = vpop.f32.mrf.mxu0
  %v174 = vadd.f32 %v56, %v173
  %v175 = vpop.f32.mrf.mxu0
  %v176 = vadd.f32 %v56, %v175
  %177 = vdwg.mxu0
  %178 = vmatpush.bf16.msra.mxu0 %v147
  %179 = vmatpush.bf16.msra.mxu0 %v146
  %180 = vmatpush.bf16.msra.mxu0 %v145
  %181 = vmatpush.bf16.msra.mxu0 %v144
  %182 = vmatpush.bf16.msra.mxu0 %v143
  %183 = vmatpush.bf16.msra.mxu0 %v142
  %184 = vmatpush.bf16.msra.mxu0 %v141
  %185 = vmatpush.bf16.msra.mxu0 %v140
  %186 = vmatmul.bf16.gmra.mxu0 %v65
  %v187 = vpop.f32.mrf.mxu0
  %v188 = vadd.f32 %v174, %v187
  %v189 = vpop.f32.mrf.mxu0
  %v190 = vadd.f32 %v176, %v189
  %191 = vdwg.mxu0
  %v192 = vmax.f32 %v188, 0.0
  %v193 = vmax.f32 %v190, 0.0
  %v194 = vld [vmem:[%s3] sm:$0x1]
  %v196 = vperm.slane %v194, 0
  %v198 = vmul.f32 %v192, %v196
  %v199 = vmul.f32 %v193, %v196
  %v200 = vld [vmem:[%s4] sm:$0x1]
  %v202 = vperm.slane %v200, 0
  %v204 = vadd.f32 %v198, %v202
  %v205 = vadd.f32 %v199, %v202
  %206 = vst [vmem:[%s5] sm:$0xff] %v204
  %207 = vst [vmem:[%s5 + $0x8] sm:$0xff] %v205
  // Predicated region
  $region22: #{_pre_lr_jit.27} parent=0 // pred_check
    _
  $region23: #{_pre_lr_jit.27} parent=0 // pred_check_branch
    %209 = sbr.rel (0) target = $region25
  $region24: #{_pre_lr_jit.27} parent=0 // pred_region
    _
  $region25: #{_pre_lr_jit.27} parent=0 // pred_fallthru
    _
  // Predicated region
  $region26: #{_pre_lr_jit.27} parent=0 // pred_check
    _
  $region27: #{_pre_lr_jit.27} parent=0 // pred_check_branch
    %211 = sbr.rel (0) target = $region29
  $region28: #{_pre_lr_jit.27} parent=0 // pred_region
    _
  $region29: #{_pre_lr_jit.27} parent=0 // pred_fallthru
    _

// kernel: _pre_lr_jit.30
$region0: #{_pre_lr_jit.30}
  #allocation0 [shape = 'u32[]', space=smem, size = 0x4, offset = 0x4, fixed_abs, tag = 'smem constant byte address 0x4 - core index']
  #allocation1 [shape = 'u32[72,128]{1,0:T(1,128)}', space=vmem, size = 0x9000, scoped, tag = 'internal scratch']
  %s0 = inlined_call_operand.vmem [shape: bf16[16,128], index: 0, kind: input, shape index: {}]
  %s1 = inlined_call_operand.vmem [shape: bf16[128,768], index: 1, kind: input, shape index: {}]
  %s2 = inlined_call_operand.vmem [shape: f32[1,768], index: 2, kind: input, shape index: {}]
  %s3 = inlined_call_operand.vmem [shape: f32[16,768], index: 3, kind: output, shape index: {}]
  %s4 = sld [smem:[#allocation0]]
  $region22: #{_pre_lr_jit.30} parent=0
    _
  %s6 = ssub.s32 1, %s4
  %s7 = scalar_select 0, %s6, %s4
  // Predicated region
  $region2: #{_pre_lr_jit.30} parent=0 // pred_check
    _
  $region3: #{_pre_lr_jit.30} parent=0 // pred_check_branch
    %9 = sbr.rel (0) target = $region5
  $region4: #{_pre_lr_jit.30} parent=0 // pred_region
    _
  $region5: #{_pre_lr_jit.30} parent=0 // pred_fallthru
    _
  // Predicated region
  $region6: #{_pre_lr_jit.30} parent=0 // pred_check
    _
  $region7: #{_pre_lr_jit.30} parent=0 // pred_check_branch
    %11 = sbr.rel (0) target = $region9
  $region8: #{_pre_lr_jit.30} parent=0 // pred_region
    _
  $region9: #{_pre_lr_jit.30} parent=0 // pred_fallthru
    _
  // Predicated region
  $region10: #{_pre_lr_jit.30} parent=0 // pred_check
    _
  $region11: #{_pre_lr_jit.30} parent=0 // pred_check_branch
    %13 = sbr.rel (0) target = $region13
  $region12: #{_pre_lr_jit.30} parent=0 // pred_region
    _
  $region13: #{_pre_lr_jit.30} parent=0 // pred_fallthru
    _
  %v14 = vld [vmem:[%s0] sm:$0xf]
  %v15 = vld [vmem:[%s0 + $0x4] sm:$0xf]
  %v16 = vld [vmem:[%s1] sm:$0xff]
  %v17 = vld [vmem:[%s1 + $0x8] sm:$0xff]
  %v18 = vld [vmem:[%s1 + $0x10] sm:$0xff]
  %v19 = vld [vmem:[%s1 + $0x18] sm:$0xff]
  %v20 = vld [vmem:[%s1 + $0x20] sm:$0xff]
  %v21 = vld [vmem:[%s1 + $0x28] sm:$0xff]
  %v22 = vld [vmem:[%s1 + $0x30] sm:$0xff]
  %v23 = vld [vmem:[%s1 + $0x38] sm:$0xff]
  %v24 = vld [vmem:[%s1 + $0x40] sm:$0xff]
  %v25 = vld [vmem:[%s1 + $0x48] sm:$0xff]
  %v26 = vld [vmem:[%s1 + $0x50] sm:$0xff]
  %v27 = vld [vmem:[%s1 + $0x58] sm:$0xff]
  %v28 = vld [vmem:[%s1 + $0x60] sm:$0xff]
  %v29 = vld [vmem:[%s1 + $0x68] sm:$0xff]
  %v30 = vld [vmem:[%s1 + $0x70] sm:$0xff]
  %v31 = vld [vmem:[%s1 + $0x78] sm:$0xff]
  %v32 = vld [vmem:[%s1 + $0x80] sm:$0xff]
  %v33 = vld [vmem:[%s1 + $0x88] sm:$0xff]
  %v34 = vld [vmem:[%s1 + $0x90] sm:$0xff]
  %v35 = vld [vmem:[%s1 + $0x98] sm:$0xff]
  %v36 = vld [vmem:[%s1 + $0xa0] sm:$0xff]
  %v37 = vld [vmem:[%s1 + $0xa8] sm:$0xff]
  %v38 = vld [vmem:[%s1 + $0xb0] sm:$0xff]
  %v39 = vld [vmem:[%s1 + $0xb8] sm:$0xff]
  %v40 = vld [vmem:[%s1 + $0xc0] sm:$0xff]
  %v41 = vld [vmem:[%s1 + $0xc8] sm:$0xff]
  %v42 = vld [vmem:[%s1 + $0xd0] sm:$0xff]
  %v43 = vld [vmem:[%s1 + $0xd8] sm:$0xff]
  %v44 = vld [vmem:[%s1 + $0xe0] sm:$0xff]
  %v45 = vld [vmem:[%s1 + $0xe8] sm:$0xff]
  %v46 = vld [vmem:[%s1 + $0xf0] sm:$0xff]
  %v47 = vld [vmem:[%s1 + $0xf8] sm:$0xff]
  %v48 = vld [vmem:[%s1 + $0x100] sm:$0xff]
  %v49 = vld [vmem:[%s1 + $0x108] sm:$0xff]
  %v50 = vld [vmem:[%s1 + $0x110] sm:$0xff]
  %v51 = vld [vmem:[%s1 + $0x118] sm:$0xff]
  %v52 = vld [vmem:[%s1 + $0x120] sm:$0xff]
  %v53 = vld [vmem:[%s1 + $0x128] sm:$0xff]
  %v54 = vld [vmem:[%s1 + $0x130] sm:$0xff]
  %v55 = vld [vmem:[%s1 + $0x138] sm:$0xff]
  %v56 = vld [vmem:[%s1 + $0x140] sm:$0xff]
  %v57 = vld [vmem:[%s1 + $0x148] sm:$0xff]
  %v58 = vld [vmem:[%s1 + $0x150] sm:$0xff]
  %v59 = vld [vmem:[%s1 + $0x158] sm:$0xff]
  %v60 = vld [vmem:[%s1 + $0x160] sm:$0xff]
  %v61 = vld [vmem:[%s1 + $0x168] sm:$0xff]
  %v62 = vld [vmem:[%s1 + $0x170] sm:$0xff]
  %v63 = vld [vmem:[%s1 + $0x178] sm:$0xff]
  %v64 = vld [vmem:[%s2] sm:$0x3f]
  %v66 = vperm.slane %v64, 0
  %v67 = vperm.slane %v64, 1
  %v68 = vperm.slane %v64, 2
  %v69 = vperm.slane %v64, 3
  %v70 = vperm.slane %v64, 4
  %v71 = vperm.slane %v64, 5
  %v80 = vunpack.c.l.b16 %v14
  %v81 = vunpack.c.l.b16 %v15
  %v82 = vpack.c.b16 %v81, %v80
  %v132 = vunpack.c.l.b16 %v16
  %v133 = vunpack.c.h.b16 %v16
  %v134 = vunpack.c.l.b16 %v17
  %v135 = vunpack.c.h.b16 %v17
  %v136 = vunpack.c.l.b16 %v18
  %v137 = vunpack.c.h.b16 %v18
  %v138 = vunpack.c.l.b16 %v19
  %v139 = vunpack.c.h.b16 %v19
  %v140 = vunpack.c.l.b16 %v20
  %v141 = vunpack.c.h.b16 %v20
  %v142 = vunpack.c.l.b16 %v21
  %v143 = vunpack.c.h.b16 %v21
  %v144 = vunpack.c.l.b16 %v22
  %v145 = vunpack.c.h.b16 %v22
  %v146 = vunpack.c.l.b16 %v23
  %v147 = vunpack.c.h.b16 %v23
  %v148 = vunpack.c.l.b16 %v24
  %v149 = vunpack.c.h.b16 %v24
  %v150 = vunpack.c.l.b16 %v25
  %v151 = vunpack.c.h.b16 %v25
  %v152 = vunpack.c.l.b16 %v26
  %v153 = vunpack.c.h.b16 %v26
  %v154 = vunpack.c.l.b16 %v27
  %v155 = vunpack.c.h.b16 %v27
  %v156 = vunpack.c.l.b16 %v28
  %v157 = vunpack.c.h.b16 %v28
  %v158 = vunpack.c.l.b16 %v29
  %v159 = vunpack.c.h.b16 %v29
  %v160 = vunpack.c.l.b16 %v30
  %v161 = vunpack.c.h.b16 %v30
  %v162 = vunpack.c.l.b16 %v31
  %v163 = vunpack.c.h.b16 %v31
  %v164 = vunpack.c.l.b16 %v32
  %v165 = vunpack.c.h.b16 %v32
  %v166 = vunpack.c.l.b16 %v33
  %v167 = vunpack.c.h.b16 %v33
  %v168 = vunpack.c.l.b16 %v34
  %v169 = vunpack.c.h.b16 %v34
  %v170 = vunpack.c.l.b16 %v35
  %v171 = vunpack.c.h.b16 %v35
  %v172 = vunpack.c.l.b16 %v36
  %v173 = vunpack.c.h.b16 %v36
  %v174 = vunpack.c.l.b16 %v37
  %v175 = vunpack.c.h.b16 %v37
  %v176 = vunpack.c.l.b16 %v38
  %v177 = vunpack.c.h.b16 %v38
  %v178 = vunpack.c.l.b16 %v39
  %v179 = vunpack.c.h.b16 %v39
  %v180 = vunpack.c.l.b16 %v40
  %v181 = vunpack.c.h.b16 %v40
  %v182 = vunpack.c.l.b16 %v41
  %v183 = vunpack.c.h.b16 %v41
  %v184 = vunpack.c.l.b16 %v42
  %v185 = vunpack.c.h.b16 %v42
  %v186 = vunpack.c.l.b16 %v43
  %v187 = vunpack.c.h.b16 %v43
  %v188 = vunpack.c.l.b16 %v44
  %v189 = vunpack.c.h.b16 %v44
  %v190 = vunpack.c.l.b16 %v45
  %v191 = vunpack.c.h.b16 %v45
  %v192 = vunpack.c.l.b16 %v46
  %v193 = vunpack.c.h.b16 %v46
  %v194 = vunpack.c.l.b16 %v47
  %v195 = vunpack.c.h.b16 %v47
  %v196 = vunpack.c.l.b16 %v48
  %v197 = vunpack.c.h.b16 %v48
  %v198 = vunpack.c.l.b16 %v49
  %v199 = vunpack.c.h.b16 %v49
  %v200 = vunpack.c.l.b16 %v50
  %v201 = vunpack.c.h.b16 %v50
  %v202 = vunpack.c.l.b16 %v51
  %v203 = vunpack.c.h.b16 %v51
  %v204 = vunpack.c.l.b16 %v52
  %v205 = vunpack.c.h.b16 %v52
  %v206 = vunpack.c.l.b16 %v53
  %v207 = vunpack.c.h.b16 %v53
  %v208 = vunpack.c.l.b16 %v54
  %v209 = vunpack.c.h.b16 %v54
  %v210 = vunpack.c.l.b16 %v55
  %v211 = vunpack.c.h.b16 %v55
  %v212 = vunpack.c.l.b16 %v56
  %v213 = vunpack.c.h.b16 %v56
  %v214 = vunpack.c.l.b16 %v57
  %v215 = vunpack.c.h.b16 %v57
  %v216 = vunpack.c.l.b16 %v58
  %v217 = vunpack.c.h.b16 %v58
  %v218 = vunpack.c.l.b16 %v59
  %v219 = vunpack.c.h.b16 %v59
  %v220 = vunpack.c.l.b16 %v60
  %v221 = vunpack.c.h.b16 %v60
  %v222 = vunpack.c.l.b16 %v61
  %v223 = vunpack.c.h.b16 %v61
  %v224 = vunpack.c.l.b16 %v62
  %v225 = vunpack.c.h.b16 %v62
  %v226 = vunpack.c.l.b16 %v63
  %v227 = vunpack.c.h.b16 %v63
  %v228 = vpack.c.b16 %v138, %v132
  %v229 = vpack.c.b16 %v139, %v133
  %v230 = vpack.c.b16 %v140, %v134
  %v231 = vpack.c.b16 %v141, %v135
  %v232 = vpack.c.b16 %v142, %v136
  %v233 = vpack.c.b16 %v143, %v137
  %v234 = vpack.c.b16 %v150, %v144
  %v235 = vpack.c.b16 %v151, %v145
  %v236 = vpack.c.b16 %v152, %v146
  %v237 = vpack.c.b16 %v153, %v147
  %v238 = vpack.c.b16 %v154, %v148
  %v239 = vpack.c.b16 %v155, %v149
  %v240 = vpack.c.b16 %v162, %v156
  %v241 = vpack.c.b16 %v163, %v157
  %v242 = vpack.c.b16 %v164, %v158
  %v243 = vpack.c.b16 %v165, %v159
  %v244 = vpack.c.b16 %v166, %v160
  %v245 = vpack.c.b16 %v167, %v161
  %v246 = vpack.c.b16 %v174, %v168
  %v247 = vpack.c.b16 %v175, %v169
  %v248 = vpack.c.b16 %v176, %v170
  %v249 = vpack.c.b16 %v177, %v171
  %v250 = vpack.c.b16 %v178, %v172
  %v251 = vpack.c.b16 %v179, %v173
  %v252 = vpack.c.b16 %v186, %v180
  %v253 = vpack.c.b16 %v187, %v181
  %v254 = vpack.c.b16 %v188, %v182
  %v255 = vpack.c.b16 %v189, %v183
  %v256 = vpack.c.b16 %v190, %v184
  %v257 = vpack.c.b16 %v191, %v185
  %v258 = vpack.c.b16 %v198, %v192
  %v259 = vpack.c.b16 %v199, %v193
  %v260 = vpack.c.b16 %v200, %v194
  %v261 = vpack.c.b16 %v201, %v195
  %v262 = vpack.c.b16 %v202, %v196
  %v263 = vpack.c.b16 %v203, %v197
  %v264 = vpack.c.b16 %v210, %v204
  %v265 = vpack.c.b16 %v211, %v205
  %v266 = vpack.c.b16 %v212, %v206
  %v267 = vpack.c.b16 %v213, %v207
  %v268 = vpack.c.b16 %v214, %v208
  %v269 = vpack.c.b16 %v215, %v209
  %v270 = vpack.c.b16 %v222, %v216
  %v271 = vpack.c.b16 %v223, %v217
  %v272 = vpack.c.b16 %v224, %v218
  %v273 = vpack.c.b16 %v225, %v219
  %v274 = vpack.c.b16 %v226, %v220
  %v275 = vpack.c.b16 %v227, %v221
  %324 = vmatpush.bf16.msra.mxu0 %v270
  %325 = vmatpush.bf16.msra.mxu0 %v264
  %326 = vmatpush.bf16.msra.mxu0 %v258
  %327 = vmatpush.bf16.msra.mxu0 %v252
  %328 = vmatpush.bf16.msra.mxu0 %v246
  %329 = vmatpush.bf16.msra.mxu0 %v240
  %330 = vmatpush.bf16.msra.mxu0 %v234
  %331 = vmatpush.bf16.msra.mxu0 %v228
  %332 = vmatmul.bf16.gmra.mxu0 %v82
  %v333 = vpop.f32.mrf.mxu0
  %v334 = vadd.f32 %v66, %v333
  %v335 = vpop.f32.mrf.mxu0
  %v336 = vadd.f32 %v66, %v335
  %337 = vdwg.mxu0
  %338 = vmatpush.bf16.msra.mxu0 %v271
  %339 = vmatpush.bf16.msra.mxu0 %v265
  %340 = vmatpush.bf16.msra.mxu0 %v259
  %341 = vmatpush.bf16.msra.mxu0 %v253
  %342 = vmatpush.bf16.msra.mxu0 %v247
  %343 = vmatpush.bf16.msra.mxu0 %v241
  %344 = vmatpush.bf16.msra.mxu0 %v235
  %345 = vmatpush.bf16.msra.mxu0 %v229
  %346 = vmatmul.bf16.gmra.mxu0 %v82
  %v347 = vpop.f32.mrf.mxu0
  %v348 = vadd.f32 %v67, %v347
  %v349 = vpop.f32.mrf.mxu0
  %v350 = vadd.f32 %v67, %v349
  %351 = vdwg.mxu0
  %352 = vmatpush.bf16.msra.mxu0 %v272
  %353 = vmatpush.bf16.msra.mxu0 %v266
  %354 = vmatpush.bf16.msra.mxu0 %v260
  %355 = vmatpush.bf16.msra.mxu0 %v254
  %356 = vmatpush.bf16.msra.mxu0 %v248
  %357 = vmatpush.bf16.msra.mxu0 %v242
  %358 = vmatpush.bf16.msra.mxu0 %v236
  %359 = vmatpush.bf16.msra.mxu0 %v230
  %360 = vmatmul.bf16.gmra.mxu0 %v82
  %v361 = vpop.f32.mrf.mxu0
  %v362 = vadd.f32 %v68, %v361
  %v363 = vpop.f32.mrf.mxu0
  %v364 = vadd.f32 %v68, %v363
  %365 = vdwg.mxu0
  %366 = vmatpush.bf16.msra.mxu0 %v273
  %367 = vmatpush.bf16.msra.mxu0 %v267
  %368 = vmatpush.bf16.msra.mxu0 %v261
  %369 = vmatpush.bf16.msra.mxu0 %v255
  %370 = vmatpush.bf16.msra.mxu0 %v249
  %371 = vmatpush.bf16.msra.mxu0 %v243
  %372 = vmatpush.bf16.msra.mxu0 %v237
  %373 = vmatpush.bf16.msra.mxu0 %v231
  %374 = vmatmul.bf16.gmra.mxu0 %v82
  %v375 = vpop.f32.mrf.mxu0
  %v376 = vadd.f32 %v69, %v375
  %v377 = vpop.f32.mrf.mxu0
  %v378 = vadd.f32 %v69, %v377
  %379 = vdwg.mxu0
  %380 = vmatpush.bf16.msra.mxu0 %v274
  %381 = vmatpush.bf16.msra.mxu0 %v268
  %382 = vmatpush.bf16.msra.mxu0 %v262
  %383 = vmatpush.bf16.msra.mxu0 %v256
  %384 = vmatpush.bf16.msra.mxu0 %v250
  %385 = vmatpush.bf16.msra.mxu0 %v244
  %386 = vmatpush.bf16.msra.mxu0 %v238
  %387 = vmatpush.bf16.msra.mxu0 %v232
  %388 = vmatmul.bf16.gmra.mxu0 %v82
  %v389 = vpop.f32.mrf.mxu0
  %v390 = vadd.f32 %v70, %v389
  %v391 = vpop.f32.mrf.mxu0
  %v392 = vadd.f32 %v70, %v391
  %393 = vdwg.mxu0
  %394 = vmatpush.bf16.msra.mxu0 %v275
  %395 = vmatpush.bf16.msra.mxu0 %v269
  %396 = vmatpush.bf16.msra.mxu0 %v263
  %397 = vmatpush.bf16.msra.mxu0 %v257
  %398 = vmatpush.bf16.msra.mxu0 %v251
  %399 = vmatpush.bf16.msra.mxu0 %v245
  %400 = vmatpush.bf16.msra.mxu0 %v239
  %401 = vmatpush.bf16.msra.mxu0 %v233
  %402 = vmatmul.bf16.gmra.mxu0 %v82
  %v403 = vpop.f32.mrf.mxu0
  %v404 = vadd.f32 %v71, %v403
  %v405 = vpop.f32.mrf.mxu0
  %v406 = vadd.f32 %v71, %v405
  %407 = vdwg.mxu0
  %408 = vst [vmem:[%s3] sm:$0xff] %v334
  %409 = vst [vmem:[%s3 + $0x8] sm:$0xff] %v348
  %410 = vst [vmem:[%s3 + $0x10] sm:$0xff] %v362
  %411 = vst [vmem:[%s3 + $0x18] sm:$0xff] %v376
  %412 = vst [vmem:[%s3 + $0x20] sm:$0xff] %v390
  %413 = vst [vmem:[%s3 + $0x28] sm:$0xff] %v404
  %414 = vst [vmem:[%s3 + $0x30] sm:$0xff] %v336
  %415 = vst [vmem:[%s3 + $0x38] sm:$0xff] %v350
  %416 = vst [vmem:[%s3 + $0x40] sm:$0xff] %v364
  %417 = vst [vmem:[%s3 + $0x48] sm:$0xff] %v378
  %418 = vst [vmem:[%s3 + $0x50] sm:$0xff] %v392
  %419 = vst [vmem:[%s3 + $0x58] sm:$0xff] %v406
  // Predicated region
  $region14: #{_pre_lr_jit.30} parent=0 // pred_check
    _
  $region15: #{_pre_lr_jit.30} parent=0 // pred_check_branch
    %421 = sbr.rel (0) target = $region17
  $region16: #{_pre_lr_jit.30} parent=0 // pred_region
    _
  $region17: #{_pre_lr_jit.30} parent=0 // pred_fallthru
    _
  // Predicated region
  $region18: #{_pre_lr_jit.30} parent=0 // pred_check
    _
  $region19: #{_pre_lr_jit.30} parent=0 // pred_check_branch
    %423 = sbr.rel (0) target = $region21
  $region20: #{_pre_lr_jit.30} parent=0 // pred_region
    _
  $region21: #{_pre_lr_jit.30} parent=0 // pred_fallthru
    _

// kernel: squeeze.11
$region0: #{squeeze.11}
  %s0 = inlined_call_operand.vmem [shape: f32[16], index: 0, kind: input, shape index: {}]
  %s1 = inlined_call_operand.hbm [shape: f32[2,8], index: 1, kind: output, shape index: {}]
  $region1: #{squeeze.11} parent=0
    #allocation0 [shape = 'u8[1024]{0}', space=vmem, size = 0x400, scoped, tag = 'operand span for operand 1']
    #allocation1 [shape = 's32[1]{0}', space=sflag, size = 0x4, scoped, tag = 'scoped memory for squeeze.11']
    #allocation2 [shape = 'u8[4096]{0}', space=vmem, size = 0x1000, scoped, tag = 'scoped mem for output reshape']
    #allocation3 [shape = 'u8[4096]{0}', space=vmem, size = 0x1000, scoped, tag = 'scoped mem for input reshape']
    %2 = vsyncpa [#allocation1], 0
    %s4 = ssub.s32 2, 1
    %v5 = vld [vmem:[%s0] sm:%s4]
    %6 = vst [vmem:[#allocation3] sm:%s4] %v5
    %v7 = vld [vmem:[#allocation3] sm:$0x1]
    %vm8 = vcmask 64512
    %9 = vst.msk [vmem:[#allocation2] sm:$0x1] %vm8, %v7
    %v10 = vld [vmem:[#allocation3] sm:$0x1]
    %11 = vrot.lane.b32.xlu0 %v10, 120
    %v12 = vpop.permute.xlu0 %11
    %vm13 = vcmask 64512
    %s14 = scalar_lea.vmem [#allocation2], 1
    %15 = vst.msk [vmem:[%s14] sm:$0x1] %vm13, %v12
    %s17 = ssub.s32 4, 1
    %v18 = vld [vmem:[#allocation2] sm:%s17]
    %s20 = ssub.s32 4, 1
    %21 = vst [vmem:[#allocation0] sm:%s20] %v18
    %23 = vsyncadd [#allocation1], 0
    %s25 = sshll.u32 [#allocation0], 4
    %s26 = int_to_ptr.vmem [resolvable:$true] %s25
    %s27 = sshll.u32 %s1, 4
    %s28 = int_to_ptr.hbm [resolvable:$true] %s27
    %30 = dma.vmem_to_hbm [thread:$0]  %s26, 32, %s28, [#allocation1]
    %32 = dma.done [#allocation1], 32
    %33 = vsyncpa [#allocation1], 1

// kernel: _pre_lr_jit.32
$region0: #{_pre_lr_jit.32}
  #allocation0 [shape = 'u32[]', space=smem, size = 0x4, offset = 0x4, fixed_abs, tag = 'smem constant byte address 0x4 - core index']
  #allocation1 [shape = 'u32[72,128]{1,0:T(1,128)}', space=vmem, size = 0x9000, scoped, tag = 'internal scratch']
  %s0 = inlined_call_operand.vmem [shape: bf16[16,128], index: 0, kind: input, shape index: {}]
  %s1 = inlined_call_operand.vmem [shape: bf16[128,128], index: 1, kind: input, shape index: {}]
  %s2 = inlined_call_operand.vmem [shape: f32[1,128], index: 2, kind: input, shape index: {}]
  %s3 = inlined_call_operand.vmem [shape: f32[16,128], index: 3, kind: output, shape index: {}]
  %s4 = sld [smem:[#allocation0]]
  $region22: #{_pre_lr_jit.32} parent=0
    _
  %s6 = ssub.s32 1, %s4
  %s7 = scalar_select 0, %s6, %s4
  // Predicated region
  $region2: #{_pre_lr_jit.32} parent=0 // pred_check
    _
  $region3: #{_pre_lr_jit.32} parent=0 // pred_check_branch
    %9 = sbr.rel (0) target = $region5
  $region4: #{_pre_lr_jit.32} parent=0 // pred_region
    _
  $region5: #{_pre_lr_jit.32} parent=0 // pred_fallthru
    _
  // Predicated region
  $region6: #{_pre_lr_jit.32} parent=0 // pred_check
    _
  $region7: #{_pre_lr_jit.32} parent=0 // pred_check_branch
    %11 = sbr.rel (0) target = $region9
  $region8: #{_pre_lr_jit.32} parent=0 // pred_region
    _
  $region9: #{_pre_lr_jit.32} parent=0 // pred_fallthru
    _
  // Predicated region
  $region10: #{_pre_lr_jit.32} parent=0 // pred_check
    _
  $region11: #{_pre_lr_jit.32} parent=0 // pred_check_branch
    %13 = sbr.rel (0) target = $region13
  $region12: #{_pre_lr_jit.32} parent=0 // pred_region
    _
  $region13: #{_pre_lr_jit.32} parent=0 // pred_fallthru
    _
  %v14 = vld [vmem:[%s0] sm:$0xf]
  %v15 = vld [vmem:[%s0 + $0x4] sm:$0xf]
  %v16 = vld [vmem:[%s1] sm:$0xf]
  %v17 = vld [vmem:[%s1 + $0x4] sm:$0xf]
  %v18 = vld [vmem:[%s1 + $0x8] sm:$0xf]
  %v19 = vld [vmem:[%s1 + $0xc] sm:$0xf]
  %v20 = vld [vmem:[%s1 + $0x10] sm:$0xf]
  %v21 = vld [vmem:[%s1 + $0x14] sm:$0xf]
  %v22 = vld [vmem:[%s1 + $0x18] sm:$0xf]
  %v23 = vld [vmem:[%s1 + $0x1c] sm:$0xf]
  %v24 = vld [vmem:[%s1 + $0x20] sm:$0xf]
  %v25 = vld [vmem:[%s1 + $0x24] sm:$0xf]
  %v26 = vld [vmem:[%s1 + $0x28] sm:$0xf]
  %v27 = vld [vmem:[%s1 + $0x2c] sm:$0xf]
  %v28 = vld [vmem:[%s1 + $0x30] sm:$0xf]
  %v29 = vld [vmem:[%s1 + $0x34] sm:$0xf]
  %v30 = vld [vmem:[%s1 + $0x38] sm:$0xf]
  %v31 = vld [vmem:[%s1 + $0x3c] sm:$0xf]
  %v32 = vld [vmem:[%s2] sm:$0x1]
  %v34 = vperm.slane %v32, 0
  %v38 = vunpack.c.l.b16 %v14
  %v39 = vunpack.c.l.b16 %v15
  %v40 = vpack.c.b16 %v39, %v38
  %v58 = vunpack.c.l.b16 %v16
  %v59 = vunpack.c.l.b16 %v17
  %v60 = vunpack.c.l.b16 %v18
  %v61 = vunpack.c.l.b16 %v19
  %v62 = vunpack.c.l.b16 %v20
  %v63 = vunpack.c.l.b16 %v21
  %v64 = vunpack.c.l.b16 %v22
  %v65 = vunpack.c.l.b16 %v23
  %v66 = vunpack.c.l.b16 %v24
  %v67 = vunpack.c.l.b16 %v25
  %v68 = vunpack.c.l.b16 %v26
  %v69 = vunpack.c.l.b16 %v27
  %v70 = vunpack.c.l.b16 %v28
  %v71 = vunpack.c.l.b16 %v29
  %v72 = vunpack.c.l.b16 %v30
  %v73 = vunpack.c.l.b16 %v31
  %v74 = vpack.c.b16 %v59, %v58
  %v75 = vpack.c.b16 %v61, %v60
  %v76 = vpack.c.b16 %v63, %v62
  %v77 = vpack.c.b16 %v65, %v64
  %v78 = vpack.c.b16 %v67, %v66
  %v79 = vpack.c.b16 %v69, %v68
  %v80 = vpack.c.b16 %v71, %v70
  %v81 = vpack.c.b16 %v73, %v72
  %90 = vmatpush.bf16.msra.mxu0 %v81
  %91 = vmatpush.bf16.msra.mxu0 %v80
  %92 = vmatpush.bf16.msra.mxu0 %v79
  %93 = vmatpush.bf16.msra.mxu0 %v78
  %94 = vmatpush.bf16.msra.mxu0 %v77
  %95 = vmatpush.bf16.msra.mxu0 %v76
  %96 = vmatpush.bf16.msra.mxu0 %v75
  %97 = vmatpush.bf16.msra.mxu0 %v74
  %98 = vmatmul.bf16.gmra.mxu0 %v40
  %v99 = vpop.f32.mrf.mxu0
  %v100 = vadd.f32 %v34, %v99
  %v101 = vpop.f32.mrf.mxu0
  %v102 = vadd.f32 %v34, %v101
  %103 = vdwg.mxu0
  %104 = vst [vmem:[%s3] sm:$0xff] %v100
  %105 = vst [vmem:[%s3 + $0x8] sm:$0xff] %v102
  // Predicated region
  $region14: #{_pre_lr_jit.32} parent=0 // pred_check
    _
  $region15: #{_pre_lr_jit.32} parent=0 // pred_check_branch
    %107 = sbr.rel (0) target = $region17
  $region16: #{_pre_lr_jit.32} parent=0 // pred_region
    _
  $region17: #{_pre_lr_jit.32} parent=0 // pred_fallthru
    _
  // Predicated region
  $region18: #{_pre_lr_jit.32} parent=0 // pred_check
    _
  $region19: #{_pre_lr_jit.32} parent=0 // pred_check_branch
    %109 = sbr.rel (0) target = $region21
  $region20: #{_pre_lr_jit.32} parent=0 // pred_region
    _
  $region21: #{_pre_lr_jit.32} parent=0 // pred_fallthru
    _

// kernel: _pre_lr_jit.31
$region0: #{_pre_lr_jit.31}
  #allocation0 [shape = 'u32[]', space=smem, size = 0x4, offset = 0x4, fixed_abs, tag = 'smem constant byte address 0x4 - core index']
  #allocation1 [shape = 'u32[72,128]{1,0:T(1,128)}', space=vmem, size = 0x9000, scoped, tag = 'internal scratch']
  #allocation2 [shape = 'f32[2,256]{1,0:T(2,128)}', space=vmem, size = 0x800, scoped, tag = 'scratch operand']
  %s0 = inlined_call_operand.vmem [shape: f32[8,2,768], index: 0, kind: input, shape index: {}]
  %s1 = inlined_call_operand.vmem [shape: f32[256,768], index: 1, kind: input, shape index: {}]
  %s2 = inlined_call_operand.vmem [shape: f32[1,768], index: 2, kind: input, shape index: {}]
  %s3 = inlined_call_operand.vmem [shape: f32[8,2,256], index: 3, kind: output, shape index: {}]
  %s4 = sld [smem:[#allocation0]]
  $region33: #{_pre_lr_jit.31} parent=0
    _
  %s6 = ssub.s32 1, %s4
  %s7 = scalar_select 0, %s6, %s4
  // Predicated region
  $region2: #{_pre_lr_jit.31} parent=0 // pred_check
    _
  $region3: #{_pre_lr_jit.31} parent=0 // pred_check_branch
    %9 = sbr.rel (0) target = $region5
  $region4: #{_pre_lr_jit.31} parent=0 // pred_region
    _
  $region5: #{_pre_lr_jit.31} parent=0 // pred_fallthru
    _
  // Predicated region
  $region6: #{_pre_lr_jit.31} parent=0 // pred_check
    _
  $region7: #{_pre_lr_jit.31} parent=0 // pred_check_branch
    %11 = sbr.rel (0) target = $region9
  $region8: #{_pre_lr_jit.31} parent=0 // pred_region
    _
  $region9: #{_pre_lr_jit.31} parent=0 // pred_fallthru
    _
  // Predicated region
  $region10: #{_pre_lr_jit.31} parent=0 // pred_check
    _
  $region11: #{_pre_lr_jit.31} parent=0 // pred_check_branch
    %13 = sbr.rel (0) target = $region13
  $region12: #{_pre_lr_jit.31} parent=0 // pred_region
    _
  $region13: #{_pre_lr_jit.31} parent=0 // pred_fallthru
    _
  %p14 = scmp.eq.s32.totalorder 0, 0
  // Predicated region
  $region14: #{_pre_lr_jit.31} parent=0 // pred_check
    %p15 = pneg %p14
  $region15: #{_pre_lr_jit.31} parent=0 // pred_check_branch
    %17 = sbr.rel (%p15) target = $region17
  $region16: #{_pre_lr_jit.31} parent=0 // pred_region
    %18 = vst [vmem:[#allocation2] sm:$0xf] 0.0
  $region17: #{_pre_lr_jit.31} parent=0 // pred_fallthru
    _
  %v19 = vld [vmem:[#allocation2] sm:$0xf]
  loop: start=0, step=1, limit=8
  $region18: #{_pre_lr_jit.31} parent=0 // loop_pre_header
    _
  $region19: #{_pre_lr_jit.31} parent=0 // loop_header
    %s21 = sphi 0, %s25
    %p22 = scmp.ge.s32.totalorder %s21, 8
    %v26 = vphi %v19, %v549
  $region20: #{_pre_lr_jit.31} parent=0 // loop_header_branch
    %24 = sbr.rel (%p22) target = $region24
  $region21: #{_pre_lr_jit.31} parent=0 // loop_body
    %v27 = vld [vmem:[%s1] sm:$0xff]
    %v28 = vld [vmem:[%s1 + $0x8] sm:$0xff]
    %v29 = vld [vmem:[%s1 + $0x10] sm:$0xff]
    %v30 = vld [vmem:[%s1 + $0x18] sm:$0xff]
    %v31 = vld [vmem:[%s1 + $0x20] sm:$0xff]
    %v32 = vld [vmem:[%s1 + $0x28] sm:$0xff]
    %v33 = vld [vmem:[%s1 + $0x30] sm:$0xff]
    %v34 = vld [vmem:[%s1 + $0x38] sm:$0xff]
    %v35 = vld [vmem:[%s1 + $0x40] sm:$0xff]
    %v36 = vld [vmem:[%s1 + $0x48] sm:$0xff]
    %v37 = vld [vmem:[%s1 + $0x50] sm:$0xff]
    %v38 = vld [vmem:[%s1 + $0x58] sm:$0xff]
    %v39 = vld [vmem:[%s1 + $0x60] sm:$0xff]
    %v40 = vld [vmem:[%s1 + $0x68] sm:$0xff]
    %v41 = vld [vmem:[%s1 + $0x70] sm:$0xff]
    %v42 = vld [vmem:[%s1 + $0x78] sm:$0xff]
    %v43 = vld [vmem:[%s1 + $0x80] sm:$0xff]
    %v44 = vld [vmem:[%s1 + $0x88] sm:$0xff]
    %v45 = vld [vmem:[%s1 + $0x90] sm:$0xff]
    %v46 = vld [vmem:[%s1 + $0x98] sm:$0xff]
    %v47 = vld [vmem:[%s1 + $0xa0] sm:$0xff]
    %v48 = vld [vmem:[%s1 + $0xa8] sm:$0xff]
    %v49 = vld [vmem:[%s1 + $0xb0] sm:$0xff]
    %v50 = vld [vmem:[%s1 + $0xb8] sm:$0xff]
    %v51 = vld [vmem:[%s1 + $0xc0] sm:$0xff]
    %v52 = vld [vmem:[%s1 + $0xc8] sm:$0xff]
    %v53 = vld [vmem:[%s1 + $0xd0] sm:$0xff]
    %v54 = vld [vmem:[%s1 + $0xd8] sm:$0xff]
    %v55 = vld [vmem:[%s1 + $0xe0] sm:$0xff]
    %v56 = vld [vmem:[%s1 + $0xe8] sm:$0xff]
    %v57 = vld [vmem:[%s1 + $0xf0] sm:$0xff]
    %v58 = vld [vmem:[%s1 + $0xf8] sm:$0xff]
    %v59 = vld [vmem:[%s1 + $0x100] sm:$0xff]
    %v60 = vld [vmem:[%s1 + $0x108] sm:$0xff]
    %v61 = vld [vmem:[%s1 + $0x110] sm:$0xff]
    %v62 = vld [vmem:[%s1 + $0x118] sm:$0xff]
    %v63 = vld [vmem:[%s1 + $0x120] sm:$0xff]
    %v64 = vld [vmem:[%s1 + $0x128] sm:$0xff]
    %v65 = vld [vmem:[%s1 + $0x130] sm:$0xff]
    %v66 = vld [vmem:[%s1 + $0x138] sm:$0xff]
    %v67 = vld [vmem:[%s1 + $0x140] sm:$0xff]
    %v68 = vld [vmem:[%s1 + $0x148] sm:$0xff]
    %v69 = vld [vmem:[%s1 + $0x150] sm:$0xff]
    %v70 = vld [vmem:[%s1 + $0x158] sm:$0xff]
    %v71 = vld [vmem:[%s1 + $0x160] sm:$0xff]
    %v72 = vld [vmem:[%s1 + $0x168] sm:$0xff]
    %v73 = vld [vmem:[%s1 + $0x170] sm:$0xff]
    %v74 = vld [vmem:[%s1 + $0x178] sm:$0xff]
    %v75 = vld [vmem:[%s1 + $0x180] sm:$0xff]
    %v76 = vld [vmem:[%s1 + $0x188] sm:$0xff]
    %v77 = vld [vmem:[%s1 + $0x190] sm:$0xff]
    %v78 = vld [vmem:[%s1 + $0x198] sm:$0xff]
    %v79 = vld [vmem:[%s1 + $0x1a0] sm:$0xff]
    %v80 = vld [vmem:[%s1 + $0x1a8] sm:$0xff]
    %v81 = vld [vmem:[%s1 + $0x1b0] sm:$0xff]
    %v82 = vld [vmem:[%s1 + $0x1b8] sm:$0xff]
    %v83 = vld [vmem:[%s1 + $0x1c0] sm:$0xff]
    %v84 = vld [vmem:[%s1 + $0x1c8] sm:$0xff]
    %v85 = vld [vmem:[%s1 + $0x1d0] sm:$0xff]
    %v86 = vld [vmem:[%s1 + $0x1d8] sm:$0xff]
    %v87 = vld [vmem:[%s1 + $0x1e0] sm:$0xff]
    %v88 = vld [vmem:[%s1 + $0x1e8] sm:$0xff]
    %v89 = vld [vmem:[%s1 + $0x1f0] sm:$0xff]
    %v90 = vld [vmem:[%s1 + $0x1f8] sm:$0xff]
    %v91 = vld [vmem:[%s1 + $0x200] sm:$0xff]
    %v92 = vld [vmem:[%s1 + $0x208] sm:$0xff]
    %v93 = vld [vmem:[%s1 + $0x210] sm:$0xff]
    %v94 = vld [vmem:[%s1 + $0x218] sm:$0xff]
    %v95 = vld [vmem:[%s1 + $0x220] sm:$0xff]
    %v96 = vld [vmem:[%s1 + $0x228] sm:$0xff]
    %v97 = vld [vmem:[%s1 + $0x230] sm:$0xff]
    %v98 = vld [vmem:[%s1 + $0x238] sm:$0xff]
    %v99 = vld [vmem:[%s1 + $0x240] sm:$0xff]
    %v100 = vld [vmem:[%s1 + $0x248] sm:$0xff]
    %v101 = vld [vmem:[%s1 + $0x250] sm:$0xff]
    %v102 = vld [vmem:[%s1 + $0x258] sm:$0xff]
    %v103 = vld [vmem:[%s1 + $0x260] sm:$0xff]
    %v104 = vld [vmem:[%s1 + $0x268] sm:$0xff]
    %v105 = vld [vmem:[%s1 + $0x270] sm:$0xff]
    %v106 = vld [vmem:[%s1 + $0x278] sm:$0xff]
    %v107 = vld [vmem:[%s1 + $0x280] sm:$0xff]
    %v108 = vld [vmem:[%s1 + $0x288] sm:$0xff]
    %v109 = vld [vmem:[%s1 + $0x290] sm:$0xff]
    %v110 = vld [vmem:[%s1 + $0x298] sm:$0xff]
    %v111 = vld [vmem:[%s1 + $0x2a0] sm:$0xff]
    %v112 = vld [vmem:[%s1 + $0x2a8] sm:$0xff]
    %v113 = vld [vmem:[%s1 + $0x2b0] sm:$0xff]
    %v114 = vld [vmem:[%s1 + $0x2b8] sm:$0xff]
    %v115 = vld [vmem:[%s1 + $0x2c0] sm:$0xff]
    %v116 = vld [vmem:[%s1 + $0x2c8] sm:$0xff]
    %v117 = vld [vmem:[%s1 + $0x2d0] sm:$0xff]
    %v118 = vld [vmem:[%s1 + $0x2d8] sm:$0xff]
    %v119 = vld [vmem:[%s1 + $0x2e0] sm:$0xff]
    %v120 = vld [vmem:[%s1 + $0x2e8] sm:$0xff]
    %v121 = vld [vmem:[%s1 + $0x2f0] sm:$0xff]
    %v122 = vld [vmem:[%s1 + $0x2f8] sm:$0xff]
    %v123 = vld [vmem:[%s1 + $0x300] sm:$0xff]
    %v124 = vld [vmem:[%s1 + $0x308] sm:$0xff]
    %v125 = vld [vmem:[%s1 + $0x310] sm:$0xff]
    %v126 = vld [vmem:[%s1 + $0x318] sm:$0xff]
    %v127 = vld [vmem:[%s1 + $0x320] sm:$0xff]
    %v128 = vld [vmem:[%s1 + $0x328] sm:$0xff]
    %v129 = vld [vmem:[%s1 + $0x330] sm:$0xff]
    %v130 = vld [vmem:[%s1 + $0x338] sm:$0xff]
    %v131 = vld [vmem:[%s1 + $0x340] sm:$0xff]
    %v132 = vld [vmem:[%s1 + $0x348] sm:$0xff]
    %v133 = vld [vmem:[%s1 + $0x350] sm:$0xff]
    %v134 = vld [vmem:[%s1 + $0x358] sm:$0xff]
    %v135 = vld [vmem:[%s1 + $0x360] sm:$0xff]
    %v136 = vld [vmem:[%s1 + $0x368] sm:$0xff]
    %v137 = vld [vmem:[%s1 + $0x370] sm:$0xff]
    %v138 = vld [vmem:[%s1 + $0x378] sm:$0xff]
    %v139 = vld [vmem:[%s1 + $0x380] sm:$0xff]
    %v140 = vld [vmem:[%s1 + $0x388] sm:$0xff]
    %v141 = vld [vmem:[%s1 + $0x390] sm:$0xff]
    %v142 = vld [vmem:[%s1 + $0x398] sm:$0xff]
    %v143 = vld [vmem:[%s1 + $0x3a0] sm:$0xff]
    %v144 = vld [vmem:[%s1 + $0x3a8] sm:$0xff]
    %v145 = vld [vmem:[%s1 + $0x3b0] sm:$0xff]
    %v146 = vld [vmem:[%s1 + $0x3b8] sm:$0xff]
    %v147 = vld [vmem:[%s1 + $0x3c0] sm:$0xff]
    %v148 = vld [vmem:[%s1 + $0x3c8] sm:$0xff]
    %v149 = vld [vmem:[%s1 + $0x3d0] sm:$0xff]
    %v150 = vld [vmem:[%s1 + $0x3d8] sm:$0xff]
    %v151 = vld [vmem:[%s1 + $0x3e0] sm:$0xff]
    %v152 = vld [vmem:[%s1 + $0x3e8] sm:$0xff]
    %v153 = vld [vmem:[%s1 + $0x3f0] sm:$0xff]
    %v154 = vld [vmem:[%s1 + $0x3f8] sm:$0xff]
    %v155 = vld [vmem:[%s1 + $0x400] sm:$0xff]
    %v156 = vld [vmem:[%s1 + $0x408] sm:$0xff]
    %v157 = vld [vmem:[%s1 + $0x410] sm:$0xff]
    %v158 = vld [vmem:[%s1 + $0x418] sm:$0xff]
    %v159 = vld [vmem:[%s1 + $0x420] sm:$0xff]
    %v160 = vld [vmem:[%s1 + $0x428] sm:$0xff]
    %v161 = vld [vmem:[%s1 + $0x430] sm:$0xff]
    %v162 = vld [vmem:[%s1 + $0x438] sm:$0xff]
    %v163 = vld [vmem:[%s1 + $0x440] sm:$0xff]
    %v164 = vld [vmem:[%s1 + $0x448] sm:$0xff]
    %v165 = vld [vmem:[%s1 + $0x450] sm:$0xff]
    %v166 = vld [vmem:[%s1 + $0x458] sm:$0xff]
    %v167 = vld [vmem:[%s1 + $0x460] sm:$0xff]
    %v168 = vld [vmem:[%s1 + $0x468] sm:$0xff]
    %v169 = vld [vmem:[%s1 + $0x470] sm:$0xff]
    %v170 = vld [vmem:[%s1 + $0x478] sm:$0xff]
    %v171 = vld [vmem:[%s1 + $0x480] sm:$0xff]
    %v172 = vld [vmem:[%s1 + $0x488] sm:$0xff]
    %v173 = vld [vmem:[%s1 + $0x490] sm:$0xff]
    %v174 = vld [vmem:[%s1 + $0x498] sm:$0xff]
    %v175 = vld [vmem:[%s1 + $0x4a0] sm:$0xff]
    %v176 = vld [vmem:[%s1 + $0x4a8] sm:$0xff]
    %v177 = vld [vmem:[%s1 + $0x4b0] sm:$0xff]
    %v178 = vld [vmem:[%s1 + $0x4b8] sm:$0xff]
    %v179 = vld [vmem:[%s1 + $0x4c0] sm:$0xff]
    %v180 = vld [vmem:[%s1 + $0x4c8] sm:$0xff]
    %v181 = vld [vmem:[%s1 + $0x4d0] sm:$0xff]
    %v182 = vld [vmem:[%s1 + $0x4d8] sm:$0xff]
    %v183 = vld [vmem:[%s1 + $0x4e0] sm:$0xff]
    %v184 = vld [vmem:[%s1 + $0x4e8] sm:$0xff]
    %v185 = vld [vmem:[%s1 + $0x4f0] sm:$0xff]
    %v186 = vld [vmem:[%s1 + $0x4f8] sm:$0xff]
    %v187 = vld [vmem:[%s1 + $0x500] sm:$0xff]
    %v188 = vld [vmem:[%s1 + $0x508] sm:$0xff]
    %v189 = vld [vmem:[%s1 + $0x510] sm:$0xff]
    %v190 = vld [vmem:[%s1 + $0x518] sm:$0xff]
    %v191 = vld [vmem:[%s1 + $0x520] sm:$0xff]
    %v192 = vld [vmem:[%s1 + $0x528] sm:$0xff]
    %v193 = vld [vmem:[%s1 + $0x530] sm:$0xff]
    %v194 = vld [vmem:[%s1 + $0x538] sm:$0xff]
    %v195 = vld [vmem:[%s1 + $0x540] sm:$0xff]
    %v196 = vld [vmem:[%s1 + $0x548] sm:$0xff]
    %v197 = vld [vmem:[%s1 + $0x550] sm:$0xff]
    %v198 = vld [vmem:[%s1 + $0x558] sm:$0xff]
    %v199 = vld [vmem:[%s1 + $0x560] sm:$0xff]
    %v200 = vld [vmem:[%s1 + $0x568] sm:$0xff]
    %v201 = vld [vmem:[%s1 + $0x570] sm:$0xff]
    %v202 = vld [vmem:[%s1 + $0x578] sm:$0xff]
    %v203 = vld [vmem:[%s1 + $0x580] sm:$0xff]
    %v204 = vld [vmem:[%s1 + $0x588] sm:$0xff]
    %v205 = vld [vmem:[%s1 + $0x590] sm:$0xff]
    %v206 = vld [vmem:[%s1 + $0x598] sm:$0xff]
    %v207 = vld [vmem:[%s1 + $0x5a0] sm:$0xff]
    %v208 = vld [vmem:[%s1 + $0x5a8] sm:$0xff]
    %v209 = vld [vmem:[%s1 + $0x5b0] sm:$0xff]
    %v210 = vld [vmem:[%s1 + $0x5b8] sm:$0xff]
    %v211 = vld [vmem:[%s1 + $0x5c0] sm:$0xff]
    %v212 = vld [vmem:[%s1 + $0x5c8] sm:$0xff]
    %v213 = vld [vmem:[%s1 + $0x5d0] sm:$0xff]
    %v214 = vld [vmem:[%s1 + $0x5d8] sm:$0xff]
    %v215 = vld [vmem:[%s1 + $0x5e0] sm:$0xff]
    %v216 = vld [vmem:[%s1 + $0x5e8] sm:$0xff]
    %v217 = vld [vmem:[%s1 + $0x5f0] sm:$0xff]
    %v218 = vld [vmem:[%s1 + $0x5f8] sm:$0xff]
    %v219 = vld [vmem:[%s2] sm:$0x3f]
    %v221 = vperm.slane %v219, 0
    %v222 = vperm.slane %v219, 1
    %v223 = vperm.slane %v219, 2
    %v224 = vperm.slane %v219, 3
    %v225 = vperm.slane %v219, 4
    %v226 = vperm.slane %v219, 5
    %234 = vst [vmem:[#allocation1] ss:$4 sm:$0xff] %v26
    %v235 = vld.sshfl [vmem:[#allocation1] sm:$0xff pattern:$0x73625140]
    %v236 = vld.sshfl [vmem:[#allocation1 + $0x8] sm:$0xff pattern:$0x73625140]
    %239 = vmatpush.msra.mxu0 %v117
    %240 = vmatpush.msra.mxu0 %v111
    %241 = vmatpush.msra.mxu0 %v105
    %242 = vmatpush.msra.mxu0 %v99
    %243 = vmatpush.msra.mxu0 %v93
    %244 = vmatpush.msra.mxu0 %v87
    %245 = vmatpush.msra.mxu0 %v81
    %246 = vmatpush.msra.mxu0 %v75
    %247 = vmatpush.msra.mxu0 %v69
    %248 = vmatpush.msra.mxu0 %v63
    %249 = vmatpush.msra.mxu0 %v57
    %250 = vmatpush.msra.mxu0 %v51
    %251 = vmatpush.msra.mxu0 %v45
    %252 = vmatpush.msra.mxu0 %v39
    %253 = vmatpush.msra.mxu0 %v33
    %254 = vmatpush.msra.mxu0 %v27
    %255 = vmatmul.f32.gmra.mxu0 %v235
    %v256 = vpop.f32.mrf.mxu0
    %v257 = vadd.f32 %v221, %v256
    %258 = vdwg.mxu0
    %259 = vmatpush.msra.mxu0 %v213
    %260 = vmatpush.msra.mxu0 %v207
    %261 = vmatpush.msra.mxu0 %v201
    %262 = vmatpush.msra.mxu0 %v195
    %263 = vmatpush.msra.mxu0 %v189
    %264 = vmatpush.msra.mxu0 %v183
    %265 = vmatpush.msra.mxu0 %v177
    %266 = vmatpush.msra.mxu0 %v171
    %267 = vmatpush.msra.mxu0 %v165
    %268 = vmatpush.msra.mxu0 %v159
    %269 = vmatpush.msra.mxu0 %v153
    %270 = vmatpush.msra.mxu0 %v147
    %271 = vmatpush.msra.mxu0 %v141
    %272 = vmatpush.msra.mxu0 %v135
    %273 = vmatpush.msra.mxu0 %v129
    %274 = vmatpush.msra.mxu0 %v123
    %275 = vmatmul.f32.gmra.mxu0 %v236
    %v276 = vpop.f32.mrf.mxu0
    %v277 = vadd.f32 %v257, %v276
    %278 = vdwg.mxu0
    %279 = vmatpush.msra.mxu0 %v118
    %280 = vmatpush.msra.mxu0 %v112
    %281 = vmatpush.msra.mxu0 %v106
    %282 = vmatpush.msra.mxu0 %v100
    %283 = vmatpush.msra.mxu0 %v94
    %284 = vmatpush.msra.mxu0 %v88
    %285 = vmatpush.msra.mxu0 %v82
    %286 = vmatpush.msra.mxu0 %v76
    %287 = vmatpush.msra.mxu0 %v70
    %288 = vmatpush.msra.mxu0 %v64
    %289 = vmatpush.msra.mxu0 %v58
    %290 = vmatpush.msra.mxu0 %v52
    %291 = vmatpush.msra.mxu0 %v46
    %292 = vmatpush.msra.mxu0 %v40
    %293 = vmatpush.msra.mxu0 %v34
    %294 = vmatpush.msra.mxu0 %v28
    %295 = vmatmul.f32.gmra.mxu0 %v235
    %v296 = vpop.f32.mrf.mxu0
    %v297 = vadd.f32 %v222, %v296
    %298 = vdwg.mxu0
    %299 = vmatpush.msra.mxu0 %v214
    %300 = vmatpush.msra.mxu0 %v208
    %301 = vmatpush.msra.mxu0 %v202
    %302 = vmatpush.msra.mxu0 %v196
    %303 = vmatpush.msra.mxu0 %v190
    %304 = vmatpush.msra.mxu0 %v184
    %305 = vmatpush.msra.mxu0 %v178
    %306 = vmatpush.msra.mxu0 %v172
    %307 = vmatpush.msra.mxu0 %v166
    %308 = vmatpush.msra.mxu0 %v160
    %309 = vmatpush.msra.mxu0 %v154
    %310 = vmatpush.msra.mxu0 %v148
    %311 = vmatpush.msra.mxu0 %v142
    %312 = vmatpush.msra.mxu0 %v136
    %313 = vmatpush.msra.mxu0 %v130
    %314 = vmatpush.msra.mxu0 %v124
    %315 = vmatmul.f32.gmra.mxu0 %v236
    %v316 = vpop.f32.mrf.mxu0
    %v317 = vadd.f32 %v297, %v316
    %318 = vdwg.mxu0
    %319 = vmatpush.msra.mxu0 %v119
    %320 = vmatpush.msra.mxu0 %v113
    %321 = vmatpush.msra.mxu0 %v107
    %322 = vmatpush.msra.mxu0 %v101
    %323 = vmatpush.msra.mxu0 %v95
    %324 = vmatpush.msra.mxu0 %v89
    %325 = vmatpush.msra.mxu0 %v83
    %326 = vmatpush.msra.mxu0 %v77
    %327 = vmatpush.msra.mxu0 %v71
    %328 = vmatpush.msra.mxu0 %v65
    %329 = vmatpush.msra.mxu0 %v59
    %330 = vmatpush.msra.mxu0 %v53
    %331 = vmatpush.msra.mxu0 %v47
    %332 = vmatpush.msra.mxu0 %v41
    %333 = vmatpush.msra.mxu0 %v35
    %334 = vmatpush.msra.mxu0 %v29
    %335 = vmatmul.f32.gmra.mxu0 %v235
    %v336 = vpop.f32.mrf.mxu0
    %v337 = vadd.f32 %v223, %v336
    %338 = vdwg.mxu0
    %339 = vmatpush.msra.mxu0 %v215
    %340 = vmatpush.msra.mxu0 %v209
    %341 = vmatpush.msra.mxu0 %v203
    %342 = vmatpush.msra.mxu0 %v197
    %343 = vmatpush.msra.mxu0 %v191
    %344 = vmatpush.msra.mxu0 %v185
    %345 = vmatpush.msra.mxu0 %v179
    %346 = vmatpush.msra.mxu0 %v173
    %347 = vmatpush.msra.mxu0 %v167
    %348 = vmatpush.msra.mxu0 %v161
    %349 = vmatpush.msra.mxu0 %v155
    %350 = vmatpush.msra.mxu0 %v149
    %351 = vmatpush.msra.mxu0 %v143
    %352 = vmatpush.msra.mxu0 %v137
    %353 = vmatpush.msra.mxu0 %v131
    %354 = vmatpush.msra.mxu0 %v125
    %355 = vmatmul.f32.gmra.mxu0 %v236
    %v356 = vpop.f32.mrf.mxu0
    %v357 = vadd.f32 %v337, %v356
    %358 = vdwg.mxu0
    %359 = vmatpush.msra.mxu0 %v120
    %360 = vmatpush.msra.mxu0 %v114
    %361 = vmatpush.msra.mxu0 %v108
    %362 = vmatpush.msra.mxu0 %v102
    %363 = vmatpush.msra.mxu0 %v96
    %364 = vmatpush.msra.mxu0 %v90
    %365 = vmatpush.msra.mxu0 %v84
    %366 = vmatpush.msra.mxu0 %v78
    %367 = vmatpush.msra.mxu0 %v72
    %368 = vmatpush.msra.mxu0 %v66
    %369 = vmatpush.msra.mxu0 %v60
    %370 = vmatpush.msra.mxu0 %v54
    %371 = vmatpush.msra.mxu0 %v48
    %372 = vmatpush.msra.mxu0 %v42
    %373 = vmatpush.msra.mxu0 %v36
    %374 = vmatpush.msra.mxu0 %v30
    %375 = vmatmul.f32.gmra.mxu0 %v235
    %v376 = vpop.f32.mrf.mxu0
    %v377 = vadd.f32 %v224, %v376
    %378 = vdwg.mxu0
    %379 = vmatpush.msra.mxu0 %v216
    %380 = vmatpush.msra.mxu0 %v210
    %381 = vmatpush.msra.mxu0 %v204
    %382 = vmatpush.msra.mxu0 %v198
    %383 = vmatpush.msra.mxu0 %v192
    %384 = vmatpush.msra.mxu0 %v186
    %385 = vmatpush.msra.mxu0 %v180
    %386 = vmatpush.msra.mxu0 %v174
    %387 = vmatpush.msra.mxu0 %v168
    %388 = vmatpush.msra.mxu0 %v162
    %389 = vmatpush.msra.mxu0 %v156
    %390 = vmatpush.msra.mxu0 %v150
    %391 = vmatpush.msra.mxu0 %v144
    %392 = vmatpush.msra.mxu0 %v138
    %393 = vmatpush.msra.mxu0 %v132
    %394 = vmatpush.msra.mxu0 %v126
    %395 = vmatmul.f32.gmra.mxu0 %v236
    %v396 = vpop.f32.mrf.mxu0
    %v397 = vadd.f32 %v377, %v396
    %398 = vdwg.mxu0
    %399 = vmatpush.msra.mxu0 %v121
    %400 = vmatpush.msra.mxu0 %v115
    %401 = vmatpush.msra.mxu0 %v109
    %402 = vmatpush.msra.mxu0 %v103
    %403 = vmatpush.msra.mxu0 %v97
    %404 = vmatpush.msra.mxu0 %v91
    %405 = vmatpush.msra.mxu0 %v85
    %406 = vmatpush.msra.mxu0 %v79
    %407 = vmatpush.msra.mxu0 %v73
    %408 = vmatpush.msra.mxu0 %v67
    %409 = vmatpush.msra.mxu0 %v61
    %410 = vmatpush.msra.mxu0 %v55
    %411 = vmatpush.msra.mxu0 %v49
    %412 = vmatpush.msra.mxu0 %v43
    %413 = vmatpush.msra.mxu0 %v37
    %414 = vmatpush.msra.mxu0 %v31
    %415 = vmatmul.f32.gmra.mxu0 %v235
    %v416 = vpop.f32.mrf.mxu0
    %v417 = vadd.f32 %v225, %v416
    %418 = vdwg.mxu0
    %419 = vmatpush.msra.mxu0 %v217
    %420 = vmatpush.msra.mxu0 %v211
    %421 = vmatpush.msra.mxu0 %v205
    %422 = vmatpush.msra.mxu0 %v199
    %423 = vmatpush.msra.mxu0 %v193
    %424 = vmatpush.msra.mxu0 %v187
    %425 = vmatpush.msra.mxu0 %v181
    %426 = vmatpush.msra.mxu0 %v175
    %427 = vmatpush.msra.mxu0 %v169
    %428 = vmatpush.msra.mxu0 %v163
    %429 = vmatpush.msra.mxu0 %v157
    %430 = vmatpush.msra.mxu0 %v151
    %431 = vmatpush.msra.mxu0 %v145
    %432 = vmatpush.msra.mxu0 %v139
    %433 = vmatpush.msra.mxu0 %v133
    %434 = vmatpush.msra.mxu0 %v127
    %435 = vmatmul.f32.gmra.mxu0 %v236
    %v436 = vpop.f32.mrf.mxu0
    %v437 = vadd.f32 %v417, %v436
    %438 = vdwg.mxu0
    %439 = vmatpush.msra.mxu0 %v122
    %440 = vmatpush.msra.mxu0 %v116
    %441 = vmatpush.msra.mxu0 %v110
    %442 = vmatpush.msra.mxu0 %v104
    %443 = vmatpush.msra.mxu0 %v98
    %444 = vmatpush.msra.mxu0 %v92
    %445 = vmatpush.msra.mxu0 %v86
    %446 = vmatpush.msra.mxu0 %v80
    %447 = vmatpush.msra.mxu0 %v74
    %448 = vmatpush.msra.mxu0 %v68
    %449 = vmatpush.msra.mxu0 %v62
    %450 = vmatpush.msra.mxu0 %v56
    %451 = vmatpush.msra.mxu0 %v50
    %452 = vmatpush.msra.mxu0 %v44
    %453 = vmatpush.msra.mxu0 %v38
    %454 = vmatpush.msra.mxu0 %v32
    %455 = vmatmul.f32.gmra.mxu0 %v235
    %v456 = vpop.f32.mrf.mxu0
    %v457 = vadd.f32 %v226, %v456
    %458 = vdwg.mxu0
    %459 = vmatpush.msra.mxu0 %v218
    %460 = vmatpush.msra.mxu0 %v212
    %461 = vmatpush.msra.mxu0 %v206
    %462 = vmatpush.msra.mxu0 %v200
    %463 = vmatpush.msra.mxu0 %v194
    %464 = vmatpush.msra.mxu0 %v188
    %465 = vmatpush.msra.mxu0 %v182
    %466 = vmatpush.msra.mxu0 %v176
    %467 = vmatpush.msra.mxu0 %v170
    %468 = vmatpush.msra.mxu0 %v164
    %469 = vmatpush.msra.mxu0 %v158
    %470 = vmatpush.msra.mxu0 %v152
    %471 = vmatpush.msra.mxu0 %v146
    %472 = vmatpush.msra.mxu0 %v140
    %473 = vmatpush.msra.mxu0 %v134
    %474 = vmatpush.msra.mxu0 %v128
    %475 = vmatmul.f32.gmra.mxu0 %v236
    %v476 = vpop.f32.mrf.mxu0
    %v477 = vadd.f32 %v457, %v476
    %478 = vdwg.mxu0
    %s479 = smul.u32 %s21, 6
    %s480 = smul.addr %s479, 2
    %s481 = scalar_lea.vmem %s0, %s480
    %v482 = vld [vmem:[%s481] sm:$0xff]
    %v483 = vld [vmem:[%s481 + $0x8] sm:$0xf]
    %v486 = vrot.slane %v317, 6
    %vm487 = vcmask 1041408
    %v488 = vsel %vm487, %v277, %v486
    %v490 = vadd.f32 %v482, %v488
    %v491 = vxor.u32 %v490, 2147483648
    %v492 = vmul.f32 %v491, 1.442695
    %v493 = vpow.pop %v492
    %v494 = vadd.f32 %v493, 1.0
    %v495 = vrcp.pop %v494
    %v496 = vmul.f32 %v494, %v495
    %v497 = vsub.f32 1.0, %v496
    %v498 = vmul.f32 %v495, %v497
    %v499 = vadd.f32 %v495, %v498
    %vm500 = vweird.f32 %v494
    %vm501 = vweird.f32 %v495
    %vm502 = vmor %vm500, %vm501
    %v503 = vsel %vm502, %v495, %v499
    %v504 = vand.u32 2147483647, %v494
    %vm505 = vcmp.eq.f32.partialorder %v504, 8.507059e+37
    %v506 = vand.u32 %v494, 2147483648
    %v507 = vor.u32 1.1754944e-38, %v506
    %v508 = vsel %vm505, %v507, %v503
    %v509 = vmul.f32 1.0, %v508
    %v511 = vrot.slane %v482, 4
    %v515 = vrot.slane %v397, 6
    %v516 = vsel %vm487, %v357, %v515
    %v518 = vadd.f32 %v511, %v516
    %v519 = vxor.u32 %v518, 2147483648
    %v520 = vmul.f32 %v519, 1.442695
    %v521 = vpow.pop %v520
    %v522 = vadd.f32 %v521, 1.0
    %v523 = vrcp.pop %v522
    %v524 = vmul.f32 %v522, %v523
    %v525 = vsub.f32 1.0, %v524
    %v526 = vmul.f32 %v523, %v525
    %v527 = vadd.f32 %v523, %v526
    %vm528 = vweird.f32 %v522
    %vm529 = vweird.f32 %v523
    %vm530 = vmor %vm528, %vm529
    %v531 = vsel %vm530, %v523, %v527
    %v532 = vand.u32 2147483647, %v522
    %vm533 = vcmp.eq.f32.partialorder %v532, 8.507059e+37
    %v534 = vand.u32 %v522, 2147483648
    %v535 = vor.u32 1.1754944e-38, %v534
    %v536 = vsel %vm533, %v535, %v531
    %v537 = vmul.f32 1.0, %v536
    %v540 = vrot.slane %v477, 6
    %v541 = vsel %vm487, %v437, %v540
    %v543 = vmul.f32 %v509, %v541
    %v544 = vadd.f32 %v483, %v543
    %v545 = vtanh.pop %v544
    %v546 = vsub.f32 1.0, %v537
    %v547 = vmul.f32 %v546, %v545
    %v548 = vmul.f32 %v537, %v26
    %v549 = vadd.f32 %v547, %v548
    %s550 = smul.u32 %s21, 2
    %s551 = smul.addr %s550, 2
    %s552 = scalar_lea.vmem %s3, %s551
    %553 = vst [vmem:[%s552] sm:$0xf] %v549
  $region22: #{_pre_lr_jit.31} parent=0 // loop_footer
    %s25 = sadd.s32 1, %s21
  $region23: #{_pre_lr_jit.31} parent=0 // loop_footer_branch
    %20 = sbr.rel target = $region19
  $region24: #{_pre_lr_jit.31} parent=0 // loop_exit
    _
  %554 = vst [vmem:[#allocation2] sm:$0xf] %v26
  // Predicated region
  $region25: #{_pre_lr_jit.31} parent=0 // pred_check
    _
  $region26: #{_pre_lr_jit.31} parent=0 // pred_check_branch
    %556 = sbr.rel (0) target = $region28
  $region27: #{_pre_lr_jit.31} parent=0 // pred_region
    _
  $region28: #{_pre_lr_jit.31} parent=0 // pred_fallthru
    _
  // Predicated region
  $region29: #{_pre_lr_jit.31} parent=0 // pred_check
    _
  $region30: #{_pre_lr_jit.31} parent=0 // pred_check_branch
    %558 = sbr.rel (0) target = $region32
  $region31: #{_pre_lr_jit.31} parent=0 // pred_region
    _
  $region32: #{_pre_lr_jit.31} parent=0 // pred_fallthru
    _

// kernel: _pre_lr_jit.45
$region0: #{_pre_lr_jit.45}
  #allocation0 [shape = 'u32[]', space=smem, size = 0x4, offset = 0x4, fixed_abs, tag = 'smem constant byte address 0x4 - core index']
  #allocation1 [shape = 'u32[72,128]{1,0:T(1,128)}', space=vmem, size = 0x9000, scoped, tag = 'internal scratch']
  %s0 = inlined_call_operand.vmem [shape: bf16[16,128], index: 0, kind: input, shape index: {}]
  %s1 = inlined_call_operand.vmem [shape: bf16[128,128], index: 1, kind: input, shape index: {}]
  %s2 = inlined_call_operand.vmem [shape: f32[1,128], index: 2, kind: input, shape index: {}]
  %s3 = inlined_call_operand.vmem [shape: f32[1,128], index: 3, kind: input, shape index: {}]
  %s4 = inlined_call_operand.vmem [shape: f32[1,128], index: 4, kind: input, shape index: {}]
  %s5 = inlined_call_operand.vmem [shape: f32[16,128], index: 5, kind: output, shape index: {}]
  %s6 = sld [smem:[#allocation0]]
  $region30: #{_pre_lr_jit.45} parent=0
    _
  %s8 = ssub.s32 1, %s6
  %s9 = scalar_select 0, %s8, %s6
  // Predicated region
  $region2: #{_pre_lr_jit.45} parent=0 // pred_check
    _
  $region3: #{_pre_lr_jit.45} parent=0 // pred_check_branch
    %11 = sbr.rel (0) target = $region5
  $region4: #{_pre_lr_jit.45} parent=0 // pred_region
    _
  $region5: #{_pre_lr_jit.45} parent=0 // pred_fallthru
    _
  // Predicated region
  $region6: #{_pre_lr_jit.45} parent=0 // pred_check
    _
  $region7: #{_pre_lr_jit.45} parent=0 // pred_check_branch
    %13 = sbr.rel (0) target = $region9
  $region8: #{_pre_lr_jit.45} parent=0 // pred_region
    _
  $region9: #{_pre_lr_jit.45} parent=0 // pred_fallthru
    _
  // Predicated region
  $region10: #{_pre_lr_jit.45} parent=0 // pred_check
    _
  $region11: #{_pre_lr_jit.45} parent=0 // pred_check_branch
    %15 = sbr.rel (0) target = $region13
  $region12: #{_pre_lr_jit.45} parent=0 // pred_region
    _
  $region13: #{_pre_lr_jit.45} parent=0 // pred_fallthru
    _
  // Predicated region
  $region14: #{_pre_lr_jit.45} parent=0 // pred_check
    _
  $region15: #{_pre_lr_jit.45} parent=0 // pred_check_branch
    %17 = sbr.rel (0) target = $region17
  $region16: #{_pre_lr_jit.45} parent=0 // pred_region
    _
  $region17: #{_pre_lr_jit.45} parent=0 // pred_fallthru
    _
  // Predicated region
  $region18: #{_pre_lr_jit.45} parent=0 // pred_check
    _
  $region19: #{_pre_lr_jit.45} parent=0 // pred_check_branch
    %19 = sbr.rel (0) target = $region21
  $region20: #{_pre_lr_jit.45} parent=0 // pred_region
    _
  $region21: #{_pre_lr_jit.45} parent=0 // pred_fallthru
    _
  %v20 = vld [vmem:[%s0] sm:$0xf]
  %v21 = vld [vmem:[%s0 + $0x4] sm:$0xf]
  %v22 = vld [vmem:[%s1] sm:$0xf]
  %v23 = vld [vmem:[%s1 + $0x4] sm:$0xf]
  %v24 = vld [vmem:[%s1 + $0x8] sm:$0xf]
  %v25 = vld [vmem:[%s1 + $0xc] sm:$0xf]
  %v26 = vld [vmem:[%s1 + $0x10] sm:$0xf]
  %v27 = vld [vmem:[%s1 + $0x14] sm:$0xf]
  %v28 = vld [vmem:[%s1 + $0x18] sm:$0xf]
  %v29 = vld [vmem:[%s1 + $0x1c] sm:$0xf]
  %v30 = vld [vmem:[%s1 + $0x20] sm:$0xf]
  %v31 = vld [vmem:[%s1 + $0x24] sm:$0xf]
  %v32 = vld [vmem:[%s1 + $0x28] sm:$0xf]
  %v33 = vld [vmem:[%s1 + $0x2c] sm:$0xf]
  %v34 = vld [vmem:[%s1 + $0x30] sm:$0xf]
  %v35 = vld [vmem:[%s1 + $0x34] sm:$0xf]
  %v36 = vld [vmem:[%s1 + $0x38] sm:$0xf]
  %v37 = vld [vmem:[%s1 + $0x3c] sm:$0xf]
  %v38 = vld [vmem:[%s2] sm:$0x1]
  %v40 = vperm.slane %v38, 0
  %v44 = vunpack.c.l.b16 %v20
  %v45 = vunpack.c.l.b16 %v21
  %v46 = vpack.c.b16 %v45, %v44
  %v64 = vunpack.c.l.b16 %v22
  %v65 = vunpack.c.l.b16 %v23
  %v66 = vunpack.c.l.b16 %v24
  %v67 = vunpack.c.l.b16 %v25
  %v68 = vunpack.c.l.b16 %v26
  %v69 = vunpack.c.l.b16 %v27
  %v70 = vunpack.c.l.b16 %v28
  %v71 = vunpack.c.l.b16 %v29
  %v72 = vunpack.c.l.b16 %v30
  %v73 = vunpack.c.l.b16 %v31
  %v74 = vunpack.c.l.b16 %v32
  %v75 = vunpack.c.l.b16 %v33
  %v76 = vunpack.c.l.b16 %v34
  %v77 = vunpack.c.l.b16 %v35
  %v78 = vunpack.c.l.b16 %v36
  %v79 = vunpack.c.l.b16 %v37
  %v80 = vpack.c.b16 %v65, %v64
  %v81 = vpack.c.b16 %v67, %v66
  %v82 = vpack.c.b16 %v69, %v68
  %v83 = vpack.c.b16 %v71, %v70
  %v84 = vpack.c.b16 %v73, %v72
  %v85 = vpack.c.b16 %v75, %v74
  %v86 = vpack.c.b16 %v77, %v76
  %v87 = vpack.c.b16 %v79, %v78
  %96 = vmatpush.bf16.msra.mxu0 %v87
  %97 = vmatpush.bf16.msra.mxu0 %v86
  %98 = vmatpush.bf16.msra.mxu0 %v85
  %99 = vmatpush.bf16.msra.mxu0 %v84
  %100 = vmatpush.bf16.msra.mxu0 %v83
  %101 = vmatpush.bf16.msra.mxu0 %v82
  %102 = vmatpush.bf16.msra.mxu0 %v81
  %103 = vmatpush.bf16.msra.mxu0 %v80
  %104 = vmatmul.bf16.gmra.mxu0 %v46
  %v105 = vpop.f32.mrf.mxu0
  %v106 = vadd.f32 %v40, %v105
  %v107 = vpop.f32.mrf.mxu0
  %v108 = vadd.f32 %v40, %v107
  %109 = vdwg.mxu0
  %v110 = vmax.f32 %v106, 0.0
  %v111 = vmax.f32 %v108, 0.0
  %v112 = vld [vmem:[%s3] sm:$0x1]
  %v114 = vperm.slane %v112, 0
  %v116 = vmul.f32 %v110, %v114
  %v117 = vmul.f32 %v111, %v114
  %v118 = vld [vmem:[%s4] sm:$0x1]
  %v120 = vperm.slane %v118, 0
  %v122 = vadd.f32 %v116, %v120
  %v123 = vadd.f32 %v117, %v120
  %124 = vst [vmem:[%s5] sm:$0xff] %v122
  %125 = vst [vmem:[%s5 + $0x8] sm:$0xff] %v123
  // Predicated region
  $region22: #{_pre_lr_jit.45} parent=0 // pred_check
    _
  $region23: #{_pre_lr_jit.45} parent=0 // pred_check_branch
    %127 = sbr.rel (0) target = $region25
  $region24: #{_pre_lr_jit.45} parent=0 // pred_region
    _
  $region25: #{_pre_lr_jit.45} parent=0 // pred_fallthru
    _
  // Predicated region
  $region26: #{_pre_lr_jit.45} parent=0 // pred_check
    _
  $region27: #{_pre_lr_jit.45} parent=0 // pred_check_branch
    %129 = sbr.rel (0) target = $region29
  $region28: #{_pre_lr_jit.45} parent=0 // pred_region
    _
  $region29: #{_pre_lr_jit.45} parent=0 // pred_fallthru
    _

// kernel: _pre_lr_jit.46
$region0: #{_pre_lr_jit.46}
  #allocation0 [shape = 'u32[]', space=smem, size = 0x4, offset = 0x4, fixed_abs, tag = 'smem constant byte address 0x4 - core index']
  #allocation1 [shape = 'u32[72,128]{1,0:T(1,128)}', space=vmem, size = 0x9000, scoped, tag = 'internal scratch']
  %s0 = inlined_call_operand.vmem [shape: bf16[16,384], index: 0, kind: input, shape index: {}]
  %s1 = inlined_call_operand.vmem [shape: bf16[384,128], index: 1, kind: input, shape index: {}]
  %s2 = inlined_call_operand.vmem [shape: f32[1,128], index: 2, kind: input, shape index: {}]
  %s3 = inlined_call_operand.vmem [shape: f32[1,128], index: 3, kind: input, shape index: {}]
  %s4 = inlined_call_operand.vmem [shape: f32[1,128], index: 4, kind: input, shape index: {}]
  %s5 = inlined_call_operand.vmem [shape: f32[16,128], index: 5, kind: output, shape index: {}]
  %s6 = sld [smem:[#allocation0]]
  $region30: #{_pre_lr_jit.46} parent=0
    _
  %s8 = ssub.s32 1, %s6
  %s9 = scalar_select 0, %s8, %s6
  // Predicated region
  $region2: #{_pre_lr_jit.46} parent=0 // pred_check
    _
  $region3: #{_pre_lr_jit.46} parent=0 // pred_check_branch
    %11 = sbr.rel (0) target = $region5
  $region4: #{_pre_lr_jit.46} parent=0 // pred_region
    _
  $region5: #{_pre_lr_jit.46} parent=0 // pred_fallthru
    _
  // Predicated region
  $region6: #{_pre_lr_jit.46} parent=0 // pred_check
    _
  $region7: #{_pre_lr_jit.46} parent=0 // pred_check_branch
    %13 = sbr.rel (0) target = $region9
  $region8: #{_pre_lr_jit.46} parent=0 // pred_region
    _
  $region9: #{_pre_lr_jit.46} parent=0 // pred_fallthru
    _
  // Predicated region
  $region10: #{_pre_lr_jit.46} parent=0 // pred_check
    _
  $region11: #{_pre_lr_jit.46} parent=0 // pred_check_branch
    %15 = sbr.rel (0) target = $region13
  $region12: #{_pre_lr_jit.46} parent=0 // pred_region
    _
  $region13: #{_pre_lr_jit.46} parent=0 // pred_fallthru
    _
  // Predicated region
  $region14: #{_pre_lr_jit.46} parent=0 // pred_check
    _
  $region15: #{_pre_lr_jit.46} parent=0 // pred_check_branch
    %17 = sbr.rel (0) target = $region17
  $region16: #{_pre_lr_jit.46} parent=0 // pred_region
    _
  $region17: #{_pre_lr_jit.46} parent=0 // pred_fallthru
    _
  // Predicated region
  $region18: #{_pre_lr_jit.46} parent=0 // pred_check
    _
  $region19: #{_pre_lr_jit.46} parent=0 // pred_check_branch
    %19 = sbr.rel (0) target = $region21
  $region20: #{_pre_lr_jit.46} parent=0 // pred_region
    _
  $region21: #{_pre_lr_jit.46} parent=0 // pred_fallthru
    _
  %v20 = vld [vmem:[%s0] sm:$0xff]
  %v21 = vld [vmem:[%s0 + $0x8] sm:$0xf]
  %v22 = vld [vmem:[%s0 + $0xc] sm:$0xff]
  %v23 = vld [vmem:[%s0 + $0x14] sm:$0xf]
  %v24 = vld [vmem:[%s1] sm:$0xf]
  %v25 = vld [vmem:[%s1 + $0x4] sm:$0xf]
  %v26 = vld [vmem:[%s1 + $0x8] sm:$0xf]
  %v27 = vld [vmem:[%s1 + $0xc] sm:$0xf]
  %v28 = vld [vmem:[%s1 + $0x10] sm:$0xf]
  %v29 = vld [vmem:[%s1 + $0x14] sm:$0xf]
  %v30 = vld [vmem:[%s1 + $0x18] sm:$0xf]
  %v31 = vld [vmem:[%s1 + $0x1c] sm:$0xf]
  %v32 = vld [vmem:[%s1 + $0x20] sm:$0xf]
  %v33 = vld [vmem:[%s1 + $0x24] sm:$0xf]
  %v34 = vld [vmem:[%s1 + $0x28] sm:$0xf]
  %v35 = vld [vmem:[%s1 + $0x2c] sm:$0xf]
  %v36 = vld [vmem:[%s1 + $0x30] sm:$0xf]
  %v37 = vld [vmem:[%s1 + $0x34] sm:$0xf]
  %v38 = vld [vmem:[%s1 + $0x38] sm:$0xf]
  %v39 = vld [vmem:[%s1 + $0x3c] sm:$0xf]
  %v40 = vld [vmem:[%s1 + $0x40] sm:$0xf]
  %v41 = vld [vmem:[%s1 + $0x44] sm:$0xf]
  %v42 = vld [vmem:[%s1 + $0x48] sm:$0xf]
  %v43 = vld [vmem:[%s1 + $0x4c] sm:$0xf]
  %v44 = vld [vmem:[%s1 + $0x50] sm:$0xf]
  %v45 = vld [vmem:[%s1 + $0x54] sm:$0xf]
  %v46 = vld [vmem:[%s1 + $0x58] sm:$0xf]
  %v47 = vld [vmem:[%s1 + $0x5c] sm:$0xf]
  %v48 = vld [vmem:[%s1 + $0x60] sm:$0xf]
  %v49 = vld [vmem:[%s1 + $0x64] sm:$0xf]
  %v50 = vld [vmem:[%s1 + $0x68] sm:$0xf]
  %v51 = vld [vmem:[%s1 + $0x6c] sm:$0xf]
  %v52 = vld [vmem:[%s1 + $0x70] sm:$0xf]
  %v53 = vld [vmem:[%s1 + $0x74] sm:$0xf]
  %v54 = vld [vmem:[%s1 + $0x78] sm:$0xf]
  %v55 = vld [vmem:[%s1 + $0x7c] sm:$0xf]
  %v56 = vld [vmem:[%s1 + $0x80] sm:$0xf]
  %v57 = vld [vmem:[%s1 + $0x84] sm:$0xf]
  %v58 = vld [vmem:[%s1 + $0x88] sm:$0xf]
  %v59 = vld [vmem:[%s1 + $0x8c] sm:$0xf]
  %v60 = vld [vmem:[%s1 + $0x90] sm:$0xf]
  %v61 = vld [vmem:[%s1 + $0x94] sm:$0xf]
  %v62 = vld [vmem:[%s1 + $0x98] sm:$0xf]
  %v63 = vld [vmem:[%s1 + $0x9c] sm:$0xf]
  %v64 = vld [vmem:[%s1 + $0xa0] sm:$0xf]
  %v65 = vld [vmem:[%s1 + $0xa4] sm:$0xf]
  %v66 = vld [vmem:[%s1 + $0xa8] sm:$0xf]
  %v67 = vld [vmem:[%s1 + $0xac] sm:$0xf]
  %v68 = vld [vmem:[%s1 + $0xb0] sm:$0xf]
  %v69 = vld [vmem:[%s1 + $0xb4] sm:$0xf]
  %v70 = vld [vmem:[%s1 + $0xb8] sm:$0xf]
  %v71 = vld [vmem:[%s1 + $0xbc] sm:$0xf]
  %v72 = vld [vmem:[%s2] sm:$0x1]
  %v74 = vperm.slane %v72, 0
  %v80 = vunpack.c.l.b16 %v20
  %v81 = vunpack.c.h.b16 %v20
  %v82 = vunpack.c.l.b16 %v21
  %v83 = vunpack.c.l.b16 %v22
  %v84 = vunpack.c.h.b16 %v22
  %v85 = vunpack.c.l.b16 %v23
  %v86 = vpack.c.b16 %v83, %v80
  %v87 = vpack.c.b16 %v84, %v81
  %v88 = vpack.c.b16 %v85, %v82
  %v140 = vunpack.c.l.b16 %v24
  %v141 = vunpack.c.l.b16 %v25
  %v142 = vunpack.c.l.b16 %v26
  %v143 = vunpack.c.l.b16 %v27
  %v144 = vunpack.c.l.b16 %v28
  %v145 = vunpack.c.l.b16 %v29
  %v146 = vunpack.c.l.b16 %v30
  %v147 = vunpack.c.l.b16 %v31
  %v148 = vunpack.c.l.b16 %v32
  %v149 = vunpack.c.l.b16 %v33
  %v150 = vunpack.c.l.b16 %v34
  %v151 = vunpack.c.l.b16 %v35
  %v152 = vunpack.c.l.b16 %v36
  %v153 = vunpack.c.l.b16 %v37
  %v154 = vunpack.c.l.b16 %v38
  %v155 = vunpack.c.l.b16 %v39
  %v156 = vunpack.c.l.b16 %v40
  %v157 = vunpack.c.l.b16 %v41
  %v158 = vunpack.c.l.b16 %v42
  %v159 = vunpack.c.l.b16 %v43
  %v160 = vunpack.c.l.b16 %v44
  %v161 = vunpack.c.l.b16 %v45
  %v162 = vunpack.c.l.b16 %v46
  %v163 = vunpack.c.l.b16 %v47
  %v164 = vunpack.c.l.b16 %v48
  %v165 = vunpack.c.l.b16 %v49
  %v166 = vunpack.c.l.b16 %v50
  %v167 = vunpack.c.l.b16 %v51
  %v168 = vunpack.c.l.b16 %v52
  %v169 = vunpack.c.l.b16 %v53
  %v170 = vunpack.c.l.b16 %v54
  %v171 = vunpack.c.l.b16 %v55
  %v172 = vunpack.c.l.b16 %v56
  %v173 = vunpack.c.l.b16 %v57
  %v174 = vunpack.c.l.b16 %v58
  %v175 = vunpack.c.l.b16 %v59
  %v176 = vunpack.c.l.b16 %v60
  %v177 = vunpack.c.l.b16 %v61
  %v178 = vunpack.c.l.b16 %v62
  %v179 = vunpack.c.l.b16 %v63
  %v180 = vunpack.c.l.b16 %v64
  %v181 = vunpack.c.l.b16 %v65
  %v182 = vunpack.c.l.b16 %v66
  %v183 = vunpack.c.l.b16 %v67
  %v184 = vunpack.c.l.b16 %v68
  %v185 = vunpack.c.l.b16 %v69
  %v186 = vunpack.c.l.b16 %v70
  %v187 = vunpack.c.l.b16 %v71
  %v188 = vpack.c.b16 %v141, %v140
  %v189 = vpack.c.b16 %v143, %v142
  %v190 = vpack.c.b16 %v145, %v144
  %v191 = vpack.c.b16 %v147, %v146
  %v192 = vpack.c.b16 %v149, %v148
  %v193 = vpack.c.b16 %v151, %v150
  %v194 = vpack.c.b16 %v153, %v152
  %v195 = vpack.c.b16 %v155, %v154
  %v196 = vpack.c.b16 %v157, %v156
  %v197 = vpack.c.b16 %v159, %v158
  %v198 = vpack.c.b16 %v161, %v160
  %v199 = vpack.c.b16 %v163, %v162
  %v200 = vpack.c.b16 %v165, %v164
  %v201 = vpack.c.b16 %v167, %v166
  %v202 = vpack.c.b16 %v169, %v168
  %v203 = vpack.c.b16 %v171, %v170
  %v204 = vpack.c.b16 %v173, %v172
  %v205 = vpack.c.b16 %v175, %v174
  %v206 = vpack.c.b16 %v177, %v176
  %v207 = vpack.c.b16 %v179, %v178
  %v208 = vpack.c.b16 %v181, %v180
  %v209 = vpack.c.b16 %v183, %v182
  %v210 = vpack.c.b16 %v185, %v184
  %v211 = vpack.c.b16 %v187, %v186
  %236 = vmatpush.bf16.msra.mxu0 %v195
  %237 = vmatpush.bf16.msra.mxu0 %v194
  %238 = vmatpush.bf16.msra.mxu0 %v193
  %239 = vmatpush.bf16.msra.mxu0 %v192
  %240 = vmatpush.bf16.msra.mxu0 %v191
  %241 = vmatpush.bf16.msra.mxu0 %v190
  %242 = vmatpush.bf16.msra.mxu0 %v189
  %243 = vmatpush.bf16.msra.mxu0 %v188
  %244 = vmatmul.bf16.gmra.mxu0 %v86
  %v245 = vpop.f32.mrf.mxu0
  %v246 = vadd.f32 %v74, %v245
  %v247 = vpop.f32.mrf.mxu0
  %v248 = vadd.f32 %v74, %v247
  %249 = vdwg.mxu0
  %250 = vmatpush.bf16.msra.mxu0 %v203
  %251 = vmatpush.bf16.msra.mxu0 %v202
  %252 = vmatpush.bf16.msra.mxu0 %v201
  %253 = vmatpush.bf16.msra.mxu0 %v200
  %254 = vmatpush.bf16.msra.mxu0 %v199
  %255 = vmatpush.bf16.msra.mxu0 %v198
  %256 = vmatpush.bf16.msra.mxu0 %v197
  %257 = vmatpush.bf16.msra.mxu0 %v196
  %258 = vmatmul.bf16.gmra.mxu0 %v87
  %v259 = vpop.f32.mrf.mxu0
  %v260 = vadd.f32 %v246, %v259
  %v261 = vpop.f32.mrf.mxu0
  %v262 = vadd.f32 %v248, %v261
  %263 = vdwg.mxu0
  %264 = vmatpush.bf16.msra.mxu0 %v211
  %265 = vmatpush.bf16.msra.mxu0 %v210
  %266 = vmatpush.bf16.msra.mxu0 %v209
  %267 = vmatpush.bf16.msra.mxu0 %v208
  %268 = vmatpush.bf16.msra.mxu0 %v207
  %269 = vmatpush.bf16.msra.mxu0 %v206
  %270 = vmatpush.bf16.msra.mxu0 %v205
  %271 = vmatpush.bf16.msra.mxu0 %v204
  %272 = vmatmul.bf16.gmra.mxu0 %v88
  %v273 = vpop.f32.mrf.mxu0
  %v274 = vadd.f32 %v260, %v273
  %v275 = vpop.f32.mrf.mxu0
  %v276 = vadd.f32 %v262, %v275
  %277 = vdwg.mxu0
  %v278 = vmax.f32 %v274, 0.0
  %v279 = vmax.f32 %v276, 0.0
  %v280 = vld [vmem:[%s3] sm:$0x1]
  %v282 = vperm.slane %v280, 0
  %v284 = vmul.f32 %v278, %v282
  %v285 = vmul.f32 %v279, %v282
  %v286 = vld [vmem:[%s4] sm:$0x1]
  %v288 = vperm.slane %v286, 0
  %v290 = vadd.f32 %v284, %v288
  %v291 = vadd.f32 %v285, %v288
  %292 = vst [vmem:[%s5] sm:$0xff] %v290
  %293 = vst [vmem:[%s5 + $0x8] sm:$0xff] %v291
  // Predicated region
  $region22: #{_pre_lr_jit.46} parent=0 // pred_check
    _
  $region23: #{_pre_lr_jit.46} parent=0 // pred_check_branch
    %295 = sbr.rel (0) target = $region25
  $region24: #{_pre_lr_jit.46} parent=0 // pred_region
    _
  $region25: #{_pre_lr_jit.46} parent=0 // pred_fallthru
    _
  // Predicated region
  $region26: #{_pre_lr_jit.46} parent=0 // pred_check
    _
  $region27: #{_pre_lr_jit.46} parent=0 // pred_check_branch
    %297 = sbr.rel (0) target = $region29
  $region28: #{_pre_lr_jit.46} parent=0 // pred_region
    _
  $region29: #{_pre_lr_jit.46} parent=0 // pred_fallthru
    _

// kernel: _pre_lr_jit.48
$region0: #{_pre_lr_jit.48}
  #allocation0 [shape = 'u32[]', space=smem, size = 0x4, offset = 0x4, fixed_abs, tag = 'smem constant byte address 0x4 - core index']
  #allocation1 [shape = 'u32[72,128]{1,0:T(1,128)}', space=vmem, size = 0x9000, scoped, tag = 'internal scratch']
  %s0 = inlined_call_operand.vmem [shape: f32[16,128], index: 0, kind: input, shape index: {}]
  %s1 = inlined_call_operand.vmem [shape: f32[128,256], index: 1, kind: input, shape index: {}]
  %s2 = inlined_call_operand.vmem [shape: f32[1,256], index: 2, kind: input, shape index: {}]
  %s3 = inlined_call_operand.vmem [shape: f32[16,128], index: 3, kind: output, shape index: {}]
  %s4 = sld [smem:[#allocation0]]
  $region22: #{_pre_lr_jit.48} parent=0
    _
  %s6 = ssub.s32 1, %s4
  %s7 = scalar_select 0, %s6, %s4
  // Predicated region
  $region2: #{_pre_lr_jit.48} parent=0 // pred_check
    _
  $region3: #{_pre_lr_jit.48} parent=0 // pred_check_branch
    %9 = sbr.rel (0) target = $region5
  $region4: #{_pre_lr_jit.48} parent=0 // pred_region
    _
  $region5: #{_pre_lr_jit.48} parent=0 // pred_fallthru
    _
  // Predicated region
  $region6: #{_pre_lr_jit.48} parent=0 // pred_check
    _
  $region7: #{_pre_lr_jit.48} parent=0 // pred_check_branch
    %11 = sbr.rel (0) target = $region9
  $region8: #{_pre_lr_jit.48} parent=0 // pred_region
    _
  $region9: #{_pre_lr_jit.48} parent=0 // pred_fallthru
    _
  // Predicated region
  $region10: #{_pre_lr_jit.48} parent=0 // pred_check
    _
  $region11: #{_pre_lr_jit.48} parent=0 // pred_check_branch
    %13 = sbr.rel (0) target = $region13
  $region12: #{_pre_lr_jit.48} parent=0 // pred_region
    _
  $region13: #{_pre_lr_jit.48} parent=0 // pred_fallthru
    _
  %v14 = vld [vmem:[%s0] sm:$0xff]
  %v15 = vld [vmem:[%s0 + $0x8] sm:$0xff]
  %v16 = vld [vmem:[%s1] sm:$0xff]
  %v17 = vld [vmem:[%s1 + $0x8] sm:$0xff]
  %v18 = vld [vmem:[%s1 + $0x10] sm:$0xff]
  %v19 = vld [vmem:[%s1 + $0x18] sm:$0xff]
  %v20 = vld [vmem:[%s1 + $0x20] sm:$0xff]
  %v21 = vld [vmem:[%s1 + $0x28] sm:$0xff]
  %v22 = vld [vmem:[%s1 + $0x30] sm:$0xff]
  %v23 = vld [vmem:[%s1 + $0x38] sm:$0xff]
  %v24 = vld [vmem:[%s1 + $0x40] sm:$0xff]
  %v25 = vld [vmem:[%s1 + $0x48] sm:$0xff]
  %v26 = vld [vmem:[%s1 + $0x50] sm:$0xff]
  %v27 = vld [vmem:[%s1 + $0x58] sm:$0xff]
  %v28 = vld [vmem:[%s1 + $0x60] sm:$0xff]
  %v29 = vld [vmem:[%s1 + $0x68] sm:$0xff]
  %v30 = vld [vmem:[%s1 + $0x70] sm:$0xff]
  %v31 = vld [vmem:[%s1 + $0x78] sm:$0xff]
  %v32 = vld [vmem:[%s1 + $0x80] sm:$0xff]
  %v33 = vld [vmem:[%s1 + $0x88] sm:$0xff]
  %v34 = vld [vmem:[%s1 + $0x90] sm:$0xff]
  %v35 = vld [vmem:[%s1 + $0x98] sm:$0xff]
  %v36 = vld [vmem:[%s1 + $0xa0] sm:$0xff]
  %v37 = vld [vmem:[%s1 + $0xa8] sm:$0xff]
  %v38 = vld [vmem:[%s1 + $0xb0] sm:$0xff]
  %v39 = vld [vmem:[%s1 + $0xb8] sm:$0xff]
  %v40 = vld [vmem:[%s1 + $0xc0] sm:$0xff]
  %v41 = vld [vmem:[%s1 + $0xc8] sm:$0xff]
  %v42 = vld [vmem:[%s1 + $0xd0] sm:$0xff]
  %v43 = vld [vmem:[%s1 + $0xd8] sm:$0xff]
  %v44 = vld [vmem:[%s1 + $0xe0] sm:$0xff]
  %v45 = vld [vmem:[%s1 + $0xe8] sm:$0xff]
  %v46 = vld [vmem:[%s1 + $0xf0] sm:$0xff]
  %v47 = vld [vmem:[%s1 + $0xf8] sm:$0xff]
  %v48 = vld [vmem:[%s2] sm:$0x3]
  %v50 = vperm.slane %v48, 0
  %v51 = vperm.slane %v48, 1
  %54 = vmatpush.msra.mxu0 %v46
  %55 = vmatpush.msra.mxu0 %v44
  %56 = vmatpush.msra.mxu0 %v42
  %57 = vmatpush.msra.mxu0 %v40
  %58 = vmatpush.msra.mxu0 %v38
  %59 = vmatpush.msra.mxu0 %v36
  %60 = vmatpush.msra.mxu0 %v34
  %61 = vmatpush.msra.mxu0 %v32
  %62 = vmatpush.msra.mxu0 %v30
  %63 = vmatpush.msra.mxu0 %v28
  %64 = vmatpush.msra.mxu0 %v26
  %65 = vmatpush.msra.mxu0 %v24
  %66 = vmatpush.msra.mxu0 %v22
  %67 = vmatpush.msra.mxu0 %v20
  %68 = vmatpush.msra.mxu0 %v18
  %69 = vmatpush.msra.mxu0 %v16
  %70 = vmatmul.f32.gmra.mxu0 %v14
  %v71 = vpop.f32.mrf.mxu0
  %v72 = vadd.f32 %v50, %v71
  %73 = vmatmul.f32.gmra.mxu0 %v15
  %v74 = vpop.f32.mrf.mxu0
  %v75 = vadd.f32 %v50, %v74
  %76 = vdwg.mxu0
  %77 = vmatpush.msra.mxu0 %v47
  %78 = vmatpush.msra.mxu0 %v45
  %79 = vmatpush.msra.mxu0 %v43
  %80 = vmatpush.msra.mxu0 %v41
  %81 = vmatpush.msra.mxu0 %v39
  %82 = vmatpush.msra.mxu0 %v37
  %83 = vmatpush.msra.mxu0 %v35
  %84 = vmatpush.msra.mxu0 %v33
  %85 = vmatpush.msra.mxu0 %v31
  %86 = vmatpush.msra.mxu0 %v29
  %87 = vmatpush.msra.mxu0 %v27
  %88 = vmatpush.msra.mxu0 %v25
  %89 = vmatpush.msra.mxu0 %v23
  %90 = vmatpush.msra.mxu0 %v21
  %91 = vmatpush.msra.mxu0 %v19
  %92 = vmatpush.msra.mxu0 %v17
  %93 = vmatmul.f32.gmra.mxu0 %v14
  %v94 = vpop.f32.mrf.mxu0
  %v95 = vadd.f32 %v51, %v94
  %96 = vmatmul.f32.gmra.mxu0 %v15
  %v97 = vpop.f32.mrf.mxu0
  %v98 = vadd.f32 %v51, %v97
  %99 = vdwg.mxu0
  %v100 = vmax.f32 %v72, 0.0
  %v101 = vmax.f32 %v75, 0.0
  %v102 = vxor.u32 %v95, 2147483648
  %v103 = vxor.u32 %v98, 2147483648
  %v104 = vmul.f32 %v102, 1.442695
  %v105 = vpow.pop %v104
  %v106 = vmul.f32 %v103, 1.442695
  %v107 = vpow.pop %v106
  %v108 = vadd.f32 %v105, 1.0
  %v109 = vadd.f32 %v107, 1.0
  %v110 = vrcp.pop %v108
  %v111 = vmul.f32 %v108, %v110
  %v112 = vsub.f32 1.0, %v111
  %v113 = vmul.f32 %v110, %v112
  %v114 = vadd.f32 %v110, %v113
  %vm115 = vweird.f32 %v108
  %vm116 = vweird.f32 %v110
  %vm117 = vmor %vm115, %vm116
  %v118 = vsel %vm117, %v110, %v114
  %v119 = vand.u32 2147483647, %v108
  %vm120 = vcmp.eq.f32.partialorder %v119, 8.507059e+37
  %v121 = vand.u32 %v108, 2147483648
  %v122 = vor.u32 1.1754944e-38, %v121
  %v123 = vsel %vm120, %v122, %v118
  %v124 = vmul.f32 1.0, %v123
  %v125 = vrcp.pop %v109
  %v126 = vmul.f32 %v109, %v125
  %v127 = vsub.f32 1.0, %v126
  %v128 = vmul.f32 %v125, %v127
  %v129 = vadd.f32 %v125, %v128
  %vm130 = vweird.f32 %v109
  %vm131 = vweird.f32 %v125
  %vm132 = vmor %vm130, %vm131
  %v133 = vsel %vm132, %v125, %v129
  %v134 = vand.u32 2147483647, %v109
  %vm135 = vcmp.eq.f32.partialorder %v134, 8.507059e+37
  %v136 = vand.u32 %v109, 2147483648
  %v137 = vor.u32 1.1754944e-38, %v136
  %v138 = vsel %vm135, %v137, %v133
  %v139 = vmul.f32 1.0, %v138
  %v140 = vmul.f32 %v124, %v100
  %v141 = vmul.f32 %v139, %v101
  %v142 = vsub.f32 1.0, %v124
  %v143 = vsub.f32 1.0, %v139
  %v144 = vmul.f32 %v142, %v14
  %v145 = vmul.f32 %v143, %v15
  %v146 = vadd.f32 %v140, %v144
  %v147 = vadd.f32 %v141, %v145
  %148 = vst [vmem:[%s3] sm:$0xff] %v146
  %149 = vst [vmem:[%s3 + $0x8] sm:$0xff] %v147
  // Predicated region
  $region14: #{_pre_lr_jit.48} parent=0 // pred_check
    _
  $region15: #{_pre_lr_jit.48} parent=0 // pred_check_branch
    %151 = sbr.rel (0) target = $region17
  $region16: #{_pre_lr_jit.48} parent=0 // pred_region
    _
  $region17: #{_pre_lr_jit.48} parent=0 // pred_fallthru
    _
  // Predicated region
  $region18: #{_pre_lr_jit.48} parent=0 // pred_check
    _
  $region19: #{_pre_lr_jit.48} parent=0 // pred_check_branch
    %153 = sbr.rel (0) target = $region21
  $region20: #{_pre_lr_jit.48} parent=0 // pred_region
    _
  $region21: #{_pre_lr_jit.48} parent=0 // pred_fallthru
    _

</llo_original>
